<compile_context>
chip_gen: v7x
topology: tpu7x:2x2x1
jax: 0.10.0
libtpu: 0.0.40
codegen_flags: <defaults>
</compile_context>

<pallas_src>
import functools

import jax
import jax.numpy as jnp
import numpy as np
from jax.experimental import pallas as pl
from jax.experimental.pallas import tpu as pltpu


def _round_up(x, m):
    return ((x + m - 1) // m) * m


# --------------------------------------------------------------------------- #
# Kernel: five fused conv1d(k=1)+BN(eval)+ReLU layers + streaming max/argmax
# for one (batch, point-tile) grid cell.  Activations are (C_out, blk_n).
# --------------------------------------------------------------------------- #
def _pointnet_kernel(
    x_ref,                         # (1, C, blk_n)   f32 input tile
    w1_ref, b1_ref,                # (64, C)  f32 , (64, 1)  f32
    w2_ref, b2_ref,                # (64, 64) bf16, (64, 1)  f32
    w3_ref, b3_ref,                # (64, 64) bf16, (64, 1)  f32
    w4_ref, b4_ref,                # (128, 64) bf16, (128, 1) f32
    w5_ref, b5_ref,                # (F, 128) bf16, (F, 1)   f32
    *out_refs,
    n_points: int,
    local_feats: bool,
    compute_indices: bool,
    needs_mask: bool,
):
    i = 0
    gmax_ref = out_refs[i]; i += 1                  # (1, F, 1) f32, VMEM-resident over t
    gidx_ref = None
    if compute_indices:
        gidx_ref = out_refs[i]; i += 1              # (1, F, 1) i32, VMEM-resident over t
    pf_ref = None
    if local_feats:
        pf_ref = out_refs[i]; i += 1                # (1, 64, blk_n), lane-dense

    t = pl.program_id(1)
    n_in = x_ref.shape[1]
    blk_n = x_ref.shape[2]

    # ---- init the output accumulators at the first point-tile of each batch --
    @pl.when(t == 0)
    def _():
        gmax_ref[0] = jnp.full(gmax_ref.shape[1:], -jnp.inf, gmax_ref.dtype)
        if compute_indices:
            gidx_ref[0] = jnp.zeros(gidx_ref.shape[1:], gidx_ref.dtype)

    x = x_ref[0]                                    # (C, blk_n) f32

    # ---- layer 1: C_in -> 64 on the VPU (K tiny; broadcast FMAs) ------------
    w1 = w1_ref[...]
    acc = w1[:, 0:1] * x[0:1, :]                    # (64,1)*(1,blk_n) -> (64,blk_n)
    for c in range(1, n_in):                        # static unroll; C is 3 or 4
        acc = acc + w1[:, c:c + 1] * x[c:c + 1, :]
    h = jnp.maximum(acc + b1_ref[...], 0.0)         # (64, blk_n) f32

    # ---- layers 2..5: bf16 MXU matmuls, f32 accumulate, bias + ReLU ---------
    def dense_relu(w_ref, b_ref, h_in):
        y = jnp.dot(w_ref[...], h_in.astype(jnp.bfloat16),
                    preferred_element_type=jnp.float32)
        return jnp.maximum(y + b_ref[...], 0.0)

    h = dense_relu(w2_ref, b2_ref, h)               # (64, blk_n)  = point feats
    if local_feats:
        pf_ref[0] = h.astype(pf_ref.dtype)          # lane-dense store, no transpose
    h = dense_relu(w3_ref, b3_ref, h)               # (64, blk_n)
    h = dense_relu(w4_ref, b4_ref, h)               # (128, blk_n)
    h = dense_relu(w5_ref, b5_ref, h)               # (F, blk_n)

    # ---- streaming max (+ optional first-occurrence argmax) over points -----
    ids = None
    if compute_indices or needs_mask:
        ids = jax.lax.broadcasted_iota(jnp.int32, (1, blk_n), 1) + t * blk_n
    if needs_mask:                                  # compiled out when N % blk_n == 0
        h = jnp.where(ids < n_points, h, -jnp.inf)

    tile_max = jnp.max(h, axis=1, keepdims=True)    # (F, 1)
    better = tile_max > gmax_ref[0]                 # strict '>': earlier tile wins ties

    if compute_indices:                             # compiled out when unused
        ids_f = ids.astype(jnp.float32)             # exact for N < 2^24
        cand = jnp.where(h == tile_max, ids_f, jnp.float32(3.0e38))
        tile_idx = jnp.min(cand, axis=1, keepdims=True).astype(jnp.int32)
        gidx_ref[0] = jnp.where(better, tile_idx, gidx_ref[0])
    gmax_ref[0] = jnp.where(better, tile_max, gmax_ref[0])


# --------------------------------------------------------------------------- #
# Host-side helpers
# --------------------------------------------------------------------------- #
def _fold_bn(params, eps=1e-5):
    """Fold eval-mode BatchNorm into each 1x1 conv: W' = W*g/sqrt(v+eps), b'."""
    folded = []
    for i, p in enumerate(params):
        scale = p["gamma"] / jnp.sqrt(p["var"] + eps)           # (C_out,)
        w = p["W"] * scale[:, None]                             # (C_out, C_in)
        b = (p["beta"] - p["mean"] * scale)[:, None]            # (C_out, 1)
        w = w.astype(jnp.float32 if i == 0 else jnp.bfloat16)
        folded.append((w, b.astype(jnp.float32)))
    return folded


def _choose_tiling(n_points, requested):
    """Return (blk_n, n_pad).  Multi-tile blocks must be lane-aligned (x128);
    prefer a tile that divides N so the tail mask is compiled out."""
    requested = max(128, int(requested))
    if n_points <= requested:
        return n_points, n_points                   # single tile, no padding/mask
    cap = (requested // 128) * 128
    if n_points % 128 == 0:
        for t in range(cap, 127, -128):
            if n_points % t == 0:
                return t, n_points                  # divisor tile, no mask
    return cap, _round_up(n_points, cap)


def _vmem_limit_bytes(blk_n, c_in, f, local_feats, compute_indices, pf_bytes):
    """Budget computed from actual buffers (double-buffered blocks + resident
    weights + live activations), clamped to stay v7x-safe (<= 64 MiB)."""
    b = 2 * c_in * blk_n * 4                                     # input blocks
    b += 2 * f * 4 * (2 if compute_indices else 1)               # gmax (+ gidx)
    if local_feats:
        b += 2 * 64 * blk_n * pf_bytes                           # pf blocks
    b += 64 * c_in * 4 + (64 * 64 * 2 + 64 * 128 + f * 128) * 2  # weights
    b += (3 * 64 + 128 + f) * 4                                  # biases
    b += blk_n * (2 * 64 * 6 + 128 * 6 + f * 6)                  # live activations
    return int(max(32 << 20, min(2 * b + (8 << 20), 64 << 20)))


# --------------------------------------------------------------------------- #
# Wrapper (layout / spec glue only; no hidden compute)
# --------------------------------------------------------------------------- #
def pointnet_backbone(x, params, *, local_feats=False, return_indices=False,
                      n_tile=1024, eps=1e-5, point_feats_dtype=jnp.float32):
    """Forward pass of PointNetBackbone.  x: (B, C, N) as in PyTorch."""
    B, C, N = x.shape
    folded = _fold_bn(params, eps)
    F = folded[-1][0].shape[0]

    blk_n, n_pad = _choose_tiling(N, n_tile)
    n_tiles = n_pad // blk_n
    needs_mask = n_pad != N

    x_in = x.astype(jnp.float32)
    if n_pad != N:
        x_in = jnp.pad(x_in, ((0, 0), (0, 0), (0, n_pad - N)))

    const = lambda b, t: (0, 0)
    in_specs = [pl.BlockSpec((1, C, blk_n), lambda b, t: (b, 0, t))]
    weight_args = []
    for w, bias in folded:
        in_specs.append(pl.BlockSpec(w.shape, const))            # VMEM-resident
        in_specs.append(pl.BlockSpec(bias.shape, const))
        weight_args += [w, bias]

    out_shape = [jax.ShapeDtypeStruct((B, F, 1), jnp.float32)]
    out_specs = [pl.BlockSpec((1, F, 1), lambda b, t: (b, 0, 0))]
    if return_indices:
        out_shape.append(jax.ShapeDtypeStruct((B, F, 1), jnp.int32))
        out_specs.append(pl.BlockSpec((1, F, 1), lambda b, t: (b, 0, 0)))
    if local_feats:
        out_shape.append(jax.ShapeDtypeStruct((B, 64, n_pad), point_feats_dtype))
        out_specs.append(pl.BlockSpec((1, 64, blk_n), lambda b, t: (b, 0, t)))

    kernel = functools.partial(
        _pointnet_kernel, n_points=N, local_feats=local_feats,
        compute_indices=return_indices, needs_mask=needs_mask)

    pf_bytes = jnp.dtype(point_feats_dtype).itemsize
    flops = 2 * B * n_pad * (C * 64 + 64 * 64 + 64 * 64 + 64 * 128 + 128 * F)
    bytes_accessed = (B * C * n_pad * 4
                      + B * F * 4 * (2 if return_indices else 1)
                      + (B * 64 * n_pad * pf_bytes if local_feats else 0)
                      + sum(int(w.size) * w.dtype.itemsize + int(bv.size) * 4
                            for w, bv in folded))

    # TODO(synk): add a B==1 path that splits the point-tile axis across the two
    # v7x TensorCores (batch-only "parallel" leaves one core idle for B==1).
    outs = pl.pallas_call(
        kernel,
        out_shape=out_shape,
        grid_spec=pltpu.PrefetchScalarGridSpec(
            num_scalar_prefetch=0,
            grid=(B, n_tiles),
            in_specs=in_specs,
            out_specs=out_specs),
        compiler_params=pltpu.CompilerParams(
            dimension_semantics=("parallel", "arbitrary"),
            vmem_limit_bytes=_vmem_limit_bytes(
                blk_n, C, F, local_feats, return_indices, pf_bytes)),
        cost_estimate=pl.CostEstimate(flops=flops, transcendentals=0,
                                      bytes_accessed=bytes_accessed),
    )(x_in, *weight_args)

    i = 0
    gmax = outs[i][:, :, 0]; i += 1                    # (B, F)
    gidx = None
    if return_indices:
        gidx = outs[i][:, :, 0]; i += 1                # (B, F) int32
    if local_feats:
        pf = outs[i][:, :, :N].astype(jnp.float32)     # (B, 64, N), already transposed
        feats = jnp.concatenate(
            [pf, jnp.broadcast_to(gmax[:, :, None], (B, F, N))], axis=1)
    else:
        feats = gmax

    if return_indices:
        return feats, gidx
    return feats


# --------------------------------------------------------------------------- #
# Parameter init + pure-JAX f32 reference (mirrors the PyTorch module, eval BN)
# --------------------------------------------------------------------------- #
def init_params(key, in_channels, n_global_feats=1024):
    dims = [(in_channels, 64), (64, 64), (64, 64), (64, 128),
            (128, n_global_feats)]
    params = []
    for cin, cout in dims:
        key, kw, kg, kb, km, kv = jax.random.split(key, 6)
        params.append(dict(
            W=jax.random.normal(kw, (cout, cin), jnp.float32) / np.sqrt(cin),
            gamma=1.0 + 0.1 * jax.random.normal(kg, (cout,), jnp.float32),
            beta=0.1 * jax.random.normal(kb, (cout,), jnp.float32),
            mean=0.1 * jax.random.normal(km, (cout,), jnp.float32),
            var=jax.random.uniform(kv, (cout,), jnp.float32,
                                   minval=0.5, maxval=1.5),
        ))
    return params


def reference_forward(x, params, *, local_feats=False, eps=1e-5):
    h = x.astype(jnp.float32)
    point_feats = None
    for i, p in enumerate(params):
        scale = p["gamma"] / jnp.sqrt(p["var"] + eps)
        y = jnp.einsum("oi,bin->bon", p["W"], h)
        y = y * scale[None, :, None] + (p["beta"] - p["mean"] * scale)[None, :, None]
        h = jnp.maximum(y, 0.0)
        if i == 1:
            point_feats = h
    gmax = jnp.max(h, axis=2)
    gidx = jnp.argmax(h, axis=2).astype(jnp.int32)
    if local_feats:
        N = x.shape[2]
        feats = jnp.concatenate(
            [point_feats,
             jnp.broadcast_to(gmax[:, :, None], (*gmax.shape, N))], axis=1)
    else:
        feats = gmax
    return feats, gidx


# --------------------------------------------------------------------------- #
if __name__ == "__main__":
    key = jax.random.PRNGKey(0)
    kx, kp, kx3, kp3 = jax.random.split(key, 4)

    # ---- case 1: global features + critical indices (single-tile, no mask) --
    B, C, N, F = 2, 4, 64, 256
    x = jax.random.normal(kx, (B, C, N), jnp.float32)
    params = init_params(kp, C, F)

    feats, idx = pointnet_backbone(x, params, local_feats=False,
                                   return_indices=True)
    feats = jax.block_until_ready(feats)
    idx = jax.block_until_ready(idx)
    assert feats.shape == (B, F) and feats.dtype == jnp.float32
    assert idx.shape == (B, F) and idx.dtype == jnp.int32
    assert bool(jnp.all((idx >= 0) & (idx < N)))
    ref_feats, _ = reference_forward(x, params, local_feats=False)
    rel = float(jnp.max(jnp.abs(feats - ref_feats)) /
                (jnp.max(jnp.abs(ref_feats)) + 1e-6))
    assert rel < 0.1, f"global feature mismatch, rel err {rel}"

    # ---- case 2: local+global concatenated features (no indices epilogue) ---
    lfeats = pointnet_backbone(x, params, local_feats=True, return_indices=False)
    lfeats = jax.block_until_ready(lfeats)
    assert lfeats.shape == (B, 64 + F, N)
    ref_lfeats, _ = reference_forward(x, params, local_feats=True)
    rel_l = float(jnp.max(jnp.abs(lfeats - ref_lfeats)) /
                  (jnp.max(jnp.abs(ref_lfeats)) + 1e-6))
    assert rel_l < 0.1, f"local feature mismatch, rel err {rel_l}"

    # ---- case 3: multi-tile + tail-mask path (C=3, N not tile-aligned) ------
    B3, C3, N3, F3 = 1, 3, 200, 128
    x3 = jax.random.normal(kx3, (B3, C3, N3), jnp.float32)
    params3 = init_params(kp3, C3, F3)
    feats3, idx3 = pointnet_backbone(x3, params3, return_indices=True,
                                     n_tile=128)
    feats3 = jax.block_until_ready(feats3)
    assert feats3.shape == (B3, F3)
    assert bool(jnp.all((idx3 >= 0) & (idx3 < N3)))
    ref3, _ = reference_forward(x3, params3)
    rel3 = float(jnp.max(jnp.abs(feats3 - ref3)) /
                 (jnp.max(jnp.abs(ref3)) + 1e-6))
    assert rel3 < 0.1, f"masked-path mismatch, rel err {rel3}"

    print("KERNEL_OK")
</pallas_src>

<mosaic_0001>
module attributes {stable_mosaic.version = 11 : i64} {
  func.func @_pointnet_kernel(%arg0: i32, %arg1: i32, %arg2: memref<1x4x64xf32, #tpu.memory_space<vmem>>, %arg3: memref<64x4xf32, #tpu.memory_space<vmem>>, %arg4: memref<64x1xf32, #tpu.memory_space<vmem>>, %arg5: memref<64x64xbf16, #tpu.memory_space<vmem>>, %arg6: memref<64x1xf32, #tpu.memory_space<vmem>>, %arg7: memref<64x64xbf16, #tpu.memory_space<vmem>>, %arg8: memref<64x1xf32, #tpu.memory_space<vmem>>, %arg9: memref<128x64xbf16, #tpu.memory_space<vmem>>, %arg10: memref<128x1xf32, #tpu.memory_space<vmem>>, %arg11: memref<256x128xbf16, #tpu.memory_space<vmem>>, %arg12: memref<256x1xf32, #tpu.memory_space<vmem>>, %arg13: memref<1x256x1xf32, #tpu.memory_space<vmem>>, %arg14: memref<1x256x1xi32, #tpu.memory_space<vmem>>) attributes {dimension_semantics = [#tpu.dimension_semantics<parallel>, #tpu.dimension_semantics<arbitrary>], iteration_bounds = array<i64: 2, 1>, scalar_prefetch = 0 : i64, scratch_operands = 0 : i64, tpu.core_type = #tpu.core_type<tc>, window_params = [{transform_indices = @transform_0, window_bounds = array<i64: 1, 4, 64>}, {pipeline_mode = #tpu.pipeline_mode<synchronous>, transform_indices = @transform_1, window_bounds = array<i64: 64, 4>}, {pipeline_mode = #tpu.pipeline_mode<synchronous>, transform_indices = @transform_2, window_bounds = array<i64: 64, 1>}, {pipeline_mode = #tpu.pipeline_mode<synchronous>, transform_indices = @transform_3, window_bounds = array<i64: 64, 64>}, {pipeline_mode = #tpu.pipeline_mode<synchronous>, transform_indices = @transform_4, window_bounds = array<i64: 64, 1>}, {pipeline_mode = #tpu.pipeline_mode<synchronous>, transform_indices = @transform_5, window_bounds = array<i64: 64, 64>}, {pipeline_mode = #tpu.pipeline_mode<synchronous>, transform_indices = @transform_6, window_bounds = array<i64: 64, 1>}, {pipeline_mode = #tpu.pipeline_mode<synchronous>, transform_indices = @transform_7, window_bounds = array<i64: 128, 64>}, {pipeline_mode = #tpu.pipeline_mode<synchronous>, transform_indices = @transform_8, window_bounds = array<i64: 128, 1>}, {pipeline_mode = #tpu.pipeline_mode<synchronous>, transform_indices = @transform_9, window_bounds = array<i64: 256, 128>}, {pipeline_mode = #tpu.pipeline_mode<synchronous>, transform_indices = @transform_10, window_bounds = array<i64: 256, 1>}, {transform_indices = @transform_11, window_bounds = array<i64: 1, 256, 1>}, {transform_indices = @transform_12, window_bounds = array<i64: 1, 256, 1>}]} {
    %c0_i32 = arith.constant 0 : i32
    %0 = arith.cmpi eq, %arg1, %c0_i32 : i32
    %1 = arith.extui %0 : i1 to i32
    %c0_i32_0 = arith.constant 0 : i32
    %2 = arith.cmpi ne, %1, %c0_i32_0 : i32
    scf.if %2 {
      %cst_49 = arith.constant 0xFF800000 : f32
      %97 = vector.broadcast %cst_49 : f32 to vector<256x1xf32>
      %c0_50 = arith.constant 0 : index
      %c0_51 = arith.constant 0 : index
      %c0_52 = arith.constant 0 : index
      %98 = vector.load %arg13[%c0_50, %c0_51, %c0_52] : memref<1x256x1xf32, #tpu.memory_space<vmem>>, vector<1x256x1xf32>
      %99 = vector.shape_cast %98 : vector<1x256x1xf32> to vector<256x1xf32>
      %100 = vector.shape_cast %97 : vector<256x1xf32> to vector<1x256x1xf32>
      tpu.vector_store %arg13[%c0_50, %c0_51, %c0_52], %100 {strides = array<i32>} : memref<1x256x1xf32, #tpu.memory_space<vmem>>, vector<1x256x1xf32>,
      %c0_i32_53 = arith.constant 0 : i32
      %101 = vector.broadcast %c0_i32_53 : i32 to vector<256x1xi32>
      %c0_54 = arith.constant 0 : index
      %c0_55 = arith.constant 0 : index
      %c0_56 = arith.constant 0 : index
      %102 = vector.load %arg14[%c0_54, %c0_55, %c0_56] : memref<1x256x1xi32, #tpu.memory_space<vmem>>, vector<1x256x1xi32>
      %103 = vector.shape_cast %102 : vector<1x256x1xi32> to vector<256x1xi32>
      %104 = vector.shape_cast %101 : vector<256x1xi32> to vector<1x256x1xi32>
      tpu.vector_store %arg14[%c0_54, %c0_55, %c0_56], %104 {strides = array<i32>} : memref<1x256x1xi32, #tpu.memory_space<vmem>>, vector<1x256x1xi32>,
    } else {
    }
    %c0 = arith.constant 0 : index
    %c0_1 = arith.constant 0 : index
    %c0_2 = arith.constant 0 : index
    %3 = vector.load %arg2[%c0, %c0_1, %c0_2] : memref<1x4x64xf32, #tpu.memory_space<vmem>>, vector<1x4x64xf32>
    %4 = vector.shape_cast %3 : vector<1x4x64xf32> to vector<4x64xf32>
    %c0_3 = arith.constant 0 : index
    %c0_4 = arith.constant 0 : index
    %5 = vector.load %arg3[%c0_3, %c0_4] : memref<64x4xf32, #tpu.memory_space<vmem>>, vector<64x4xf32>
    %6 = vector.extract_strided_slice %5 {offsets = [0, 0], sizes = [64, 1], strides = [1, 1]} : vector<64x4xf32> to vector<64x1xf32>
    %7 = vector.extract_strided_slice %4 {offsets = [0, 0], sizes = [1, 64], strides = [1, 1]} : vector<4x64xf32> to vector<1x64xf32>
    %8 = vector.broadcast %6 : vector<64x1xf32> to vector<64x64xf32>
    %9 = vector.broadcast %7 : vector<1x64xf32> to vector<64x64xf32>
    %10 = arith.mulf %8, %9 : vector<64x64xf32>
    %11 = vector.extract_strided_slice %5 {offsets = [0, 1], sizes = [64, 1], strides = [1, 1]} : vector<64x4xf32> to vector<64x1xf32>
    %12 = vector.extract_strided_slice %4 {offsets = [1, 0], sizes = [1, 64], strides = [1, 1]} : vector<4x64xf32> to vector<1x64xf32>
    %13 = vector.broadcast %11 : vector<64x1xf32> to vector<64x64xf32>
    %14 = vector.broadcast %12 : vector<1x64xf32> to vector<64x64xf32>
    %15 = arith.mulf %13, %14 : vector<64x64xf32>
    %16 = arith.addf %10, %15 : vector<64x64xf32>
    %17 = vector.extract_strided_slice %5 {offsets = [0, 2], sizes = [64, 1], strides = [1, 1]} : vector<64x4xf32> to vector<64x1xf32>
    %18 = vector.extract_strided_slice %4 {offsets = [2, 0], sizes = [1, 64], strides = [1, 1]} : vector<4x64xf32> to vector<1x64xf32>
    %19 = vector.broadcast %17 : vector<64x1xf32> to vector<64x64xf32>
    %20 = vector.broadcast %18 : vector<1x64xf32> to vector<64x64xf32>
    %21 = arith.mulf %19, %20 : vector<64x64xf32>
    %22 = arith.addf %16, %21 : vector<64x64xf32>
    %23 = vector.extract_strided_slice %5 {offsets = [0, 3], sizes = [64, 1], strides = [1, 1]} : vector<64x4xf32> to vector<64x1xf32>
    %24 = vector.extract_strided_slice %4 {offsets = [3, 0], sizes = [1, 64], strides = [1, 1]} : vector<4x64xf32> to vector<1x64xf32>
    %25 = vector.broadcast %23 : vector<64x1xf32> to vector<64x64xf32>
    %26 = vector.broadcast %24 : vector<1x64xf32> to vector<64x64xf32>
    %27 = arith.mulf %25, %26 : vector<64x64xf32>
    %28 = arith.addf %22, %27 : vector<64x64xf32>
    %c0_5 = arith.constant 0 : index
    %c0_6 = arith.constant 0 : index
    %29 = vector.load %arg4[%c0_5, %c0_6] : memref<64x1xf32, #tpu.memory_space<vmem>>, vector<64x1xf32>
    %30 = vector.broadcast %29 : vector<64x1xf32> to vector<64x64xf32>
    %31 = arith.addf %28, %30 : vector<64x64xf32>
    %cst = arith.constant 0.000000e+00 : f32
    %32 = vector.broadcast %cst : f32 to vector<64x64xf32>
    %33 = arith.maximumf %31, %32 : vector<64x64xf32>
    %c0_7 = arith.constant 0 : index
    %c0_8 = arith.constant 0 : index
    %34 = vector.load %arg5[%c0_7, %c0_8] : memref<64x64xbf16, #tpu.memory_space<vmem>>, vector<64x64xbf16>
    %35 = arith.truncf %33 : vector<64x64xf32> to vector<64x64xbf16>
    %cst_9 = arith.constant dense<0.000000e+00> : vector<64x64xf32>
    %36 = tpu.matmul %34, %35, %cst_9 {dimension_numbers = #tpu.dot_dimension_numbers<[1], [0], [0], [1], [0, 0, 1, 1], [], []>} : vector<64x64xbf16>, vector<64x64xbf16>, vector<64x64xf32> -> vector<64x64xf32>
    %c0_10 = arith.constant 0 : index
    %c0_11 = arith.constant 0 : index
    %37 = vector.load %arg6[%c0_10, %c0_11] : memref<64x1xf32, #tpu.memory_space<vmem>>, vector<64x1xf32>
    %38 = vector.broadcast %37 : vector<64x1xf32> to vector<64x64xf32>
    %39 = arith.addf %36, %38 : vector<64x64xf32>
    %cst_12 = arith.constant 0.000000e+00 : f32
    %40 = vector.broadcast %cst_12 : f32 to vector<64x64xf32>
    %41 = arith.maximumf %39, %40 : vector<64x64xf32>
    %c0_13 = arith.constant 0 : index
    %c0_14 = arith.constant 0 : index
    %42 = vector.load %arg7[%c0_13, %c0_14] : memref<64x64xbf16, #tpu.memory_space<vmem>>, vector<64x64xbf16>
    %43 = arith.truncf %41 : vector<64x64xf32> to vector<64x64xbf16>
    %cst_15 = arith.constant dense<0.000000e+00> : vector<64x64xf32>
    %44 = tpu.matmul %42, %43, %cst_15 {dimension_numbers = #tpu.dot_dimension_numbers<[1], [0], [0], [1], [0, 0, 1, 1], [], []>} : vector<64x64xbf16>, vector<64x64xbf16>, vector<64x64xf32> -> vector<64x64xf32>
    %c0_16 = arith.constant 0 : index
    %c0_17 = arith.constant 0 : index
    %45 = vector.load %arg8[%c0_16, %c0_17] : memref<64x1xf32, #tpu.memory_space<vmem>>, vector<64x1xf32>
    %46 = vector.broadcast %45 : vector<64x1xf32> to vector<64x64xf32>
    %47 = arith.addf %44, %46 : vector<64x64xf32>
    %cst_18 = arith.constant 0.000000e+00 : f32
    %48 = vector.broadcast %cst_18 : f32 to vector<64x64xf32>
    %49 = arith.maximumf %47, %48 : vector<64x64xf32>
    %c0_19 = arith.constant 0 : index
    %c0_20 = arith.constant 0 : index
    %50 = vector.load %arg9[%c0_19, %c0_20] : memref<128x64xbf16, #tpu.memory_space<vmem>>, vector<128x64xbf16>
    %51 = arith.truncf %49 : vector<64x64xf32> to vector<64x64xbf16>
    %cst_21 = arith.constant dense<0.000000e+00> : vector<128x64xf32>
    %52 = tpu.matmul %50, %51, %cst_21 {dimension_numbers = #tpu.dot_dimension_numbers<[1], [0], [0], [1], [0, 0, 1, 1], [], []>} : vector<128x64xbf16>, vector<64x64xbf16>, vector<128x64xf32> -> vector<128x64xf32>
    %c0_22 = arith.constant 0 : index
    %c0_23 = arith.constant 0 : index
    %53 = vector.load %arg10[%c0_22, %c0_23] : memref<128x1xf32, #tpu.memory_space<vmem>>, vector<128x1xf32>
    %54 = vector.broadcast %53 : vector<128x1xf32> to vector<128x64xf32>
    %55 = arith.addf %52, %54 : vector<128x64xf32>
    %cst_24 = arith.constant 0.000000e+00 : f32
    %56 = vector.broadcast %cst_24 : f32 to vector<128x64xf32>
    %57 = arith.maximumf %55, %56 : vector<128x64xf32>
    %c0_25 = arith.constant 0 : index
    %c0_26 = arith.constant 0 : index
    %58 = vector.load %arg11[%c0_25, %c0_26] : memref<256x128xbf16, #tpu.memory_space<vmem>>, vector<256x128xbf16>
    %59 = arith.truncf %57 : vector<128x64xf32> to vector<128x64xbf16>
    %cst_27 = arith.constant dense<0.000000e+00> : vector<256x64xf32>
    %60 = tpu.matmul %58, %59, %cst_27 {dimension_numbers = #tpu.dot_dimension_numbers<[1], [0], [0], [1], [0, 0, 1, 1], [], []>} : vector<256x128xbf16>, vector<128x64xbf16>, vector<256x64xf32> -> vector<256x64xf32>
    %c0_28 = arith.constant 0 : index
    %c0_29 = arith.constant 0 : index
    %61 = vector.load %arg12[%c0_28, %c0_29] : memref<256x1xf32, #tpu.memory_space<vmem>>, vector<256x1xf32>
    %62 = vector.broadcast %61 : vector<256x1xf32> to vector<256x64xf32>
    %63 = arith.addf %60, %62 : vector<256x64xf32>
    %cst_30 = arith.constant 0.000000e+00 : f32
    %64 = vector.broadcast %cst_30 : f32 to vector<256x64xf32>
    %65 = arith.maximumf %63, %64 : vector<256x64xf32>
    %66 = tpu.iota {dimensions = array<i32: 1>} : vector<1x64xi32>
    %c64_i32 = arith.constant 64 : i32
    %67 = arith.muli %arg1, %c64_i32 : i32
    %68 = vector.broadcast %67 : i32 to vector<1x64xi32>
    %69 = arith.addi %66, %68 : vector<1x64xi32>
    %cst_31 = arith.constant dense<0xFF800000> : vector<256xf32>
    %70 = vector.multi_reduction <maximumf>, %65, %cst_31 [1] : vector<256x64xf32> to vector<256xf32>
    %71 = vector.shape_cast %70 : vector<256xf32> to vector<256x1xf32>
    %c0_32 = arith.constant 0 : index
    %c0_33 = arith.constant 0 : index
    %c0_34 = arith.constant 0 : index
    %72 = vector.load %arg13[%c0_32, %c0_33, %c0_34] : memref<1x256x1xf32, #tpu.memory_space<vmem>>, vector<1x256x1xf32>
    %73 = vector.shape_cast %72 : vector<1x256x1xf32> to vector<256x1xf32>
    %74 = arith.cmpf ogt, %71, %73 : vector<256x1xf32>
    %75 = arith.sitofp %69 : vector<1x64xi32> to vector<1x64xf32>
    %76 = vector.broadcast %71 : vector<256x1xf32> to vector<256x64xf32>
    %77 = arith.cmpf oeq, %65, %76 : vector<256x64xf32>
    %cst_35 = arith.constant 3.000000e+38 : f32
    %78 = vector.shape_cast %75 : vector<1x64xf32> to vector<1x64xf32>
    %79 = vector.broadcast %78 : vector<1x64xf32> to vector<256x64xf32>
    %80 = vector.broadcast %cst_35 : f32 to vector<256x64xf32>
    %81 = arith.select %77, %79, %80 : vector<256x64xi1>, vector<256x64xf32>
    %cst_36 = arith.constant dense<0x7F800000> : vector<256xf32>
    %82 = vector.multi_reduction <minimumf>, %81, %cst_36 [1] : vector<256x64xf32> to vector<256xf32>
    %83 = vector.shape_cast %82 : vector<256xf32> to vector<256x1xf32>
    %84 = arith.fptosi %83 : vector<256x1xf32> to vector<256x1xi32>
    %c0_37 = arith.constant 0 : index
    %c0_38 = arith.constant 0 : index
    %c0_39 = arith.constant 0 : index
    %85 = vector.load %arg14[%c0_37, %c0_38, %c0_39] : memref<1x256x1xi32, #tpu.memory_space<vmem>>, vector<1x256x1xi32>
    %86 = vector.shape_cast %85 : vector<1x256x1xi32> to vector<256x1xi32>
    %87 = arith.select %74, %84, %86 : vector<256x1xi1>, vector<256x1xi32>
    %c0_40 = arith.constant 0 : index
    %c0_41 = arith.constant 0 : index
    %c0_42 = arith.constant 0 : index
    %88 = vector.load %arg14[%c0_40, %c0_41, %c0_42] : memref<1x256x1xi32, #tpu.memory_space<vmem>>, vector<1x256x1xi32>
    %89 = vector.shape_cast %88 : vector<1x256x1xi32> to vector<256x1xi32>
    %90 = vector.shape_cast %87 : vector<256x1xi32> to vector<1x256x1xi32>
    tpu.vector_store %arg14[%c0_40, %c0_41, %c0_42], %90 {strides = array<i32>} : memref<1x256x1xi32, #tpu.memory_space<vmem>>, vector<1x256x1xi32>,
    %c0_43 = arith.constant 0 : index
    %c0_44 = arith.constant 0 : index
    %c0_45 = arith.constant 0 : index
    %91 = vector.load %arg13[%c0_43, %c0_44, %c0_45] : memref<1x256x1xf32, #tpu.memory_space<vmem>>, vector<1x256x1xf32>
    %92 = vector.shape_cast %91 : vector<1x256x1xf32> to vector<256x1xf32>
    %93 = arith.select %74, %71, %92 : vector<256x1xi1>, vector<256x1xf32>
    %c0_46 = arith.constant 0 : index
    %c0_47 = arith.constant 0 : index
    %c0_48 = arith.constant 0 : index
    %94 = vector.load %arg13[%c0_46, %c0_47, %c0_48] : memref<1x256x1xf32, #tpu.memory_space<vmem>>, vector<1x256x1xf32>
    %95 = vector.shape_cast %94 : vector<1x256x1xf32> to vector<256x1xf32>
    %96 = vector.shape_cast %93 : vector<256x1xf32> to vector<1x256x1xf32>
    tpu.vector_store %arg13[%c0_46, %c0_47, %c0_48], %96 {strides = array<i32>} : memref<1x256x1xf32, #tpu.memory_space<vmem>>, vector<1x256x1xf32>,
    return
  }
  func.func @transform_0(%arg0: i32, %arg1: i32) -> (i32, i32, i32) {
    %c0_i32 = arith.constant 0 : i32
    %c0_i32_0 = arith.constant 0 : i32
    return %arg0, %c0_i32, %arg1 : i32, i32, i32
  }
  func.func @transform_1(%arg0: i32, %arg1: i32) -> (i32, i32) {
    %c0_i32 = arith.constant 0 : i32
    %c0_i32_0 = arith.constant 0 : i32
    %c0_i32_1 = arith.constant 0 : i32
    return %c0_i32, %c0_i32_0 : i32, i32
  }
  func.func @transform_2(%arg0: i32, %arg1: i32) -> (i32, i32) {
    %c0_i32 = arith.constant 0 : i32
    %c0_i32_0 = arith.constant 0 : i32
    %c0_i32_1 = arith.constant 0 : i32
    return %c0_i32, %c0_i32_0 : i32, i32
  }
  func.func @transform_3(%arg0: i32, %arg1: i32) -> (i32, i32) {
    %c0_i32 = arith.constant 0 : i32
    %c0_i32_0 = arith.constant 0 : i32
    %c0_i32_1 = arith.constant 0 : i32
    return %c0_i32, %c0_i32_0 : i32, i32
  }
  func.func @transform_4(%arg0: i32, %arg1: i32) -> (i32, i32) {
    %c0_i32 = arith.constant 0 : i32
    %c0_i32_0 = arith.constant 0 : i32
    %c0_i32_1 = arith.constant 0 : i32
    return %c0_i32, %c0_i32_0 : i32, i32
  }
  func.func @transform_5(%arg0: i32, %arg1: i32) -> (i32, i32) {
    %c0_i32 = arith.constant 0 : i32
    %c0_i32_0 = arith.constant 0 : i32
    %c0_i32_1 = arith.constant 0 : i32
    return %c0_i32, %c0_i32_0 : i32, i32
  }
  func.func @transform_6(%arg0: i32, %arg1: i32) -> (i32, i32) {
    %c0_i32 = arith.constant 0 : i32
    %c0_i32_0 = arith.constant 0 : i32
    %c0_i32_1 = arith.constant 0 : i32
    return %c0_i32, %c0_i32_0 : i32, i32
  }
  func.func @transform_7(%arg0: i32, %arg1: i32) -> (i32, i32) {
    %c0_i32 = arith.constant 0 : i32
    %c0_i32_0 = arith.constant 0 : i32
    %c0_i32_1 = arith.constant 0 : i32
    return %c0_i32, %c0_i32_0 : i32, i32
  }
  func.func @transform_8(%arg0: i32, %arg1: i32) -> (i32, i32) {
    %c0_i32 = arith.constant 0 : i32
    %c0_i32_0 = arith.constant 0 : i32
    %c0_i32_1 = arith.constant 0 : i32
    return %c0_i32, %c0_i32_0 : i32, i32
  }
  func.func @transform_9(%arg0: i32, %arg1: i32) -> (i32, i32) {
    %c0_i32 = arith.constant 0 : i32
    %c0_i32_0 = arith.constant 0 : i32
    %c0_i32_1 = arith.constant 0 : i32
    return %c0_i32, %c0_i32_0 : i32, i32
  }
  func.func @transform_10(%arg0: i32, %arg1: i32) -> (i32, i32) {
    %c0_i32 = arith.constant 0 : i32
    %c0_i32_0 = arith.constant 0 : i32
    %c0_i32_1 = arith.constant 0 : i32
    return %c0_i32, %c0_i32_0 : i32, i32
  }
  func.func @transform_11(%arg0: i32, %arg1: i32) -> (i32, i32, i32) {
    %c0_i32 = arith.constant 0 : i32
    %c0_i32_0 = arith.constant 0 : i32
    %c0_i32_1 = arith.constant 0 : i32
    return %arg0, %c0_i32, %c0_i32_0 : i32, i32, i32
  }
  func.func @transform_12(%arg0: i32, %arg1: i32) -> (i32, i32, i32) {
    %c0_i32 = arith.constant 0 : i32
    %c0_i32_0 = arith.constant 0 : i32
    %c0_i32_1 = arith.constant 0 : i32
    return %arg0, %c0_i32, %c0_i32_0 : i32, i32, i32
  }
}

</mosaic_0001>

<llo_original>
// kernel: tpu_custom_call.1
$region0: #{tpu_custom_call.1}
  #allocation0 [shape = 'u32[]', space=smem, size = 0x4, offset = 0x4, fixed_abs, tag = 'smem constant byte address 0x4 - core index']
  #allocation1 [shape = 'u32[144,128]{1,0:T(1,128)}', space=vmem, size = 0x12000, scoped, tag = 'internal scratch']
  %s0 = inlined_call_operand.vmem [shape: f32[2,4,64], index: 0, kind: input, shape index: {}]
  %s1 = inlined_call_operand.vmem [shape: f32[64,4], index: 1, kind: input, shape index: {}]
  %s2 = inlined_call_operand.vmem [shape: f32[64,1], index: 2, kind: input, shape index: {}]
  %s3 = inlined_call_operand.vmem [shape: bf16[64,64], index: 3, kind: input, shape index: {}]
  %s4 = inlined_call_operand.vmem [shape: f32[64,1], index: 4, kind: input, shape index: {}]
  %s5 = inlined_call_operand.vmem [shape: bf16[64,64], index: 5, kind: input, shape index: {}]
  %s6 = inlined_call_operand.vmem [shape: f32[64,1], index: 6, kind: input, shape index: {}]
  %s7 = inlined_call_operand.vmem [shape: bf16[128,64], index: 7, kind: input, shape index: {}]
  %s8 = inlined_call_operand.vmem [shape: f32[128,1], index: 8, kind: input, shape index: {}]
  %s9 = inlined_call_operand.vmem [shape: bf16[256,128], index: 9, kind: input, shape index: {}]
  %s10 = inlined_call_operand.vmem [shape: f32[256,1], index: 10, kind: input, shape index: {}]
  %s11 = inlined_call_operand.vmem [shape: f32[2,256,1], index: 11, kind: output, shape index: {0}]
  %s12 = inlined_call_operand.vmem [shape: s32[2,256,1], index: 12, kind: output, shape index: {1}]
  %13 = xla_tuple %s11, %s12
  %s14 = sld [smem:[#allocation0]]
  $region89: #{tpu_custom_call.1} parent=0
    _
  %s16 = ssub.s32 1, %s14
  %s17 = scalar_select 0, %s16, %s14
  loop: start=0, step=1, limit=4
  $region2: #{tpu_custom_call.1} parent=0 // loop_pre_header
    _
  $region3: #{tpu_custom_call.1} parent=0 // loop_header
    %s19 = sphi 0, %s23
    %p20 = scmp.ge.s32.totalorder %s19, 4
    %s26 = sphi 0, %s38
    %s27 = sphi 0, %s34
    %s28 = sphi 0, %s26
    %s29 = sphi 0, %s27
    %s30 = sphi 0, %s28
    %s31 = sphi 0, %s29
    %s43 = sphi 0, %s45
    %s46 = sphi 0, %s43
    %s47 = sphi 0, %s46
    %s63 = sphi 0, %s47
    %s67 = sphi 0, %s67
    %s69 = sphi 0, %s67
    %s70 = sphi 0, %s69
    %s84 = sphi 0, %s70
    %s88 = sphi 0, %s88
    %s90 = sphi 0, %s88
    %s91 = sphi 0, %s90
    %s105 = sphi 0, %s91
    %s109 = sphi 0, %s109
    %s111 = sphi 0, %s109
    %s112 = sphi 0, %s111
    %s126 = sphi 0, %s112
    %s130 = sphi 0, %s130
    %s132 = sphi 0, %s130
    %s133 = sphi 0, %s132
    %s147 = sphi 0, %s133
    %s151 = sphi 0, %s151
    %s153 = sphi 0, %s151
    %s154 = sphi 0, %s153
    %s168 = sphi 0, %s154
    %s172 = sphi 0, %s172
    %s174 = sphi 0, %s172
    %s175 = sphi 0, %s174
    %s189 = sphi 0, %s175
    %s193 = sphi 0, %s193
    %s195 = sphi 0, %s193
    %s196 = sphi 0, %s195
    %s210 = sphi 0, %s196
    %s214 = sphi 0, %s214
    %s216 = sphi 0, %s214
    %s217 = sphi 0, %s216
    %s231 = sphi 0, %s217
    %s235 = sphi 0, %s235
    %s237 = sphi 0, %s235
    %s238 = sphi 0, %s237
    %s252 = sphi 0, %s238
    %s256 = sphi 0, %s256
    %s258 = sphi 0, %s256
    %s259 = sphi 0, %s258
    %s273 = sphi 0, %s259
    %s279 = sphi 0, %s281
    %s282 = sphi 0, %s279
    %s283 = sphi 0, %s282
    %s299 = sphi 0, %s283
    %s305 = sphi 0, %s307
    %s308 = sphi 0, %s305
    %s309 = sphi 0, %s308
    %s325 = sphi 0, %s309
  $region4: #{tpu_custom_call.1} parent=0 // loop_header_branch
    %22 = sbr.rel (%p20) target = $region8
  $region5: #{tpu_custom_call.1} parent=0 // loop_body
    %s24 = ssub.s32 %s19, 1
    %s25 = ssub.s32 %s19, 2
    %s32 = sadd.s32 1, %s27
    %p33 = scmp.ge.s32.totalorder %s32, 1
    %s34 = scalar_select %p33, 0, %s32
    %s35 = sadd.s32 1, %s26
    %s36 = scalar_select %p33, %s35, %s26
    %p37 = scmp.ge.s32.totalorder %s36, 2
    %s38 = scalar_select %p37, 0, %s36
    %s39 = ssub.s32 %s26, %s38
    %s40 = ssub.s32 %s27, %s34
    %s41 = sor.u32 %s39, %s40
    %p42 = scmp.eq.s32.totalorder %s41, 0
    %s44 = sadd.s32 %s43, 1
    %s45 = scalar_select %p42, %s43, %s44
    %p48 = pneg %p42
    %p49 = scmp.eq.s32.totalorder %s19, 1
    %p50 = por %p48, %p49
    %p51 = scmp.ne.s32.totalorder %s43, %s46
    %p52 = scmp.eq.s32.totalorder %s19, 0
    %p53 = por %p51, %p52
    %p54 = scmp.ne.s32.totalorder %s43, %s46
    %p55 = scmp.eq.s32.totalorder %s24, 1
    %p56 = por %p54, %p55
    %p57 = scmp.ne.s32.totalorder %s46, %s47
    %p58 = scmp.eq.s32.totalorder %s24, 0
    %p59 = por %p57, %p58
    %p60 = scmp.ne.s32.totalorder %s46, %s47
    %p61 = scmp.eq.s32.totalorder %s25, 1
    %p62 = por %p60, %p61
    %p64 = scmp.ne.s32.totalorder %s47, %s63
    %p65 = scmp.eq.s32.totalorder %s25, 0
    %p66 = por %p64, %p65
    %s68 = sadd.s32 %s67, 1
    %p71 = scmp.eq.s32.totalorder %s19, 1
    %p72 = scmp.ne.s32.totalorder %s67, %s69
    %p73 = scmp.eq.s32.totalorder %s19, 0
    %p74 = por %p72, %p73
    %p75 = scmp.ne.s32.totalorder %s67, %s69
    %p76 = scmp.eq.s32.totalorder %s24, 1
    %p77 = por %p75, %p76
    %p78 = scmp.ne.s32.totalorder %s69, %s70
    %p79 = scmp.eq.s32.totalorder %s24, 0
    %p80 = por %p78, %p79
    %p81 = scmp.ne.s32.totalorder %s69, %s70
    %p82 = scmp.eq.s32.totalorder %s25, 1
    %p83 = por %p81, %p82
    %p85 = scmp.ne.s32.totalorder %s70, %s84
    %p86 = scmp.eq.s32.totalorder %s25, 0
    %p87 = por %p85, %p86
    %s89 = sadd.s32 %s88, 1
    %p92 = scmp.eq.s32.totalorder %s19, 1
    %p93 = scmp.ne.s32.totalorder %s88, %s90
    %p94 = scmp.eq.s32.totalorder %s19, 0
    %p95 = por %p93, %p94
    %p96 = scmp.ne.s32.totalorder %s88, %s90
    %p97 = scmp.eq.s32.totalorder %s24, 1
    %p98 = por %p96, %p97
    %p99 = scmp.ne.s32.totalorder %s90, %s91
    %p100 = scmp.eq.s32.totalorder %s24, 0
    %p101 = por %p99, %p100
    %p102 = scmp.ne.s32.totalorder %s90, %s91
    %p103 = scmp.eq.s32.totalorder %s25, 1
    %p104 = por %p102, %p103
    %p106 = scmp.ne.s32.totalorder %s91, %s105
    %p107 = scmp.eq.s32.totalorder %s25, 0
    %p108 = por %p106, %p107
    %s110 = sadd.s32 %s109, 1
    %p113 = scmp.eq.s32.totalorder %s19, 1
    %p114 = scmp.ne.s32.totalorder %s109, %s111
    %p115 = scmp.eq.s32.totalorder %s19, 0
    %p116 = por %p114, %p115
    %p117 = scmp.ne.s32.totalorder %s109, %s111
    %p118 = scmp.eq.s32.totalorder %s24, 1
    %p119 = por %p117, %p118
    %p120 = scmp.ne.s32.totalorder %s111, %s112
    %p121 = scmp.eq.s32.totalorder %s24, 0
    %p122 = por %p120, %p121
    %p123 = scmp.ne.s32.totalorder %s111, %s112
    %p124 = scmp.eq.s32.totalorder %s25, 1
    %p125 = por %p123, %p124
    %p127 = scmp.ne.s32.totalorder %s112, %s126
    %p128 = scmp.eq.s32.totalorder %s25, 0
    %p129 = por %p127, %p128
    %s131 = sadd.s32 %s130, 1
    %p134 = scmp.eq.s32.totalorder %s19, 1
    %p135 = scmp.ne.s32.totalorder %s130, %s132
    %p136 = scmp.eq.s32.totalorder %s19, 0
    %p137 = por %p135, %p136
    %p138 = scmp.ne.s32.totalorder %s130, %s132
    %p139 = scmp.eq.s32.totalorder %s24, 1
    %p140 = por %p138, %p139
    %p141 = scmp.ne.s32.totalorder %s132, %s133
    %p142 = scmp.eq.s32.totalorder %s24, 0
    %p143 = por %p141, %p142
    %p144 = scmp.ne.s32.totalorder %s132, %s133
    %p145 = scmp.eq.s32.totalorder %s25, 1
    %p146 = por %p144, %p145
    %p148 = scmp.ne.s32.totalorder %s133, %s147
    %p149 = scmp.eq.s32.totalorder %s25, 0
    %p150 = por %p148, %p149
    %s152 = sadd.s32 %s151, 1
    %p155 = scmp.eq.s32.totalorder %s19, 1
    %p156 = scmp.ne.s32.totalorder %s151, %s153
    %p157 = scmp.eq.s32.totalorder %s19, 0
    %p158 = por %p156, %p157
    %p159 = scmp.ne.s32.totalorder %s151, %s153
    %p160 = scmp.eq.s32.totalorder %s24, 1
    %p161 = por %p159, %p160
    %p162 = scmp.ne.s32.totalorder %s153, %s154
    %p163 = scmp.eq.s32.totalorder %s24, 0
    %p164 = por %p162, %p163
    %p165 = scmp.ne.s32.totalorder %s153, %s154
    %p166 = scmp.eq.s32.totalorder %s25, 1
    %p167 = por %p165, %p166
    %p169 = scmp.ne.s32.totalorder %s154, %s168
    %p170 = scmp.eq.s32.totalorder %s25, 0
    %p171 = por %p169, %p170
    %s173 = sadd.s32 %s172, 1
    %p176 = scmp.eq.s32.totalorder %s19, 1
    %p177 = scmp.ne.s32.totalorder %s172, %s174
    %p178 = scmp.eq.s32.totalorder %s19, 0
    %p179 = por %p177, %p178
    %p180 = scmp.ne.s32.totalorder %s172, %s174
    %p181 = scmp.eq.s32.totalorder %s24, 1
    %p182 = por %p180, %p181
    %p183 = scmp.ne.s32.totalorder %s174, %s175
    %p184 = scmp.eq.s32.totalorder %s24, 0
    %p185 = por %p183, %p184
    %p186 = scmp.ne.s32.totalorder %s174, %s175
    %p187 = scmp.eq.s32.totalorder %s25, 1
    %p188 = por %p186, %p187
    %p190 = scmp.ne.s32.totalorder %s175, %s189
    %p191 = scmp.eq.s32.totalorder %s25, 0
    %p192 = por %p190, %p191
    %s194 = sadd.s32 %s193, 1
    %p197 = scmp.eq.s32.totalorder %s19, 1
    %p198 = scmp.ne.s32.totalorder %s193, %s195
    %p199 = scmp.eq.s32.totalorder %s19, 0
    %p200 = por %p198, %p199
    %p201 = scmp.ne.s32.totalorder %s193, %s195
    %p202 = scmp.eq.s32.totalorder %s24, 1
    %p203 = por %p201, %p202
    %p204 = scmp.ne.s32.totalorder %s195, %s196
    %p205 = scmp.eq.s32.totalorder %s24, 0
    %p206 = por %p204, %p205
    %p207 = scmp.ne.s32.totalorder %s195, %s196
    %p208 = scmp.eq.s32.totalorder %s25, 1
    %p209 = por %p207, %p208
    %p211 = scmp.ne.s32.totalorder %s196, %s210
    %p212 = scmp.eq.s32.totalorder %s25, 0
    %p213 = por %p211, %p212
    %s215 = sadd.s32 %s214, 1
    %p218 = scmp.eq.s32.totalorder %s19, 1
    %p219 = scmp.ne.s32.totalorder %s214, %s216
    %p220 = scmp.eq.s32.totalorder %s19, 0
    %p221 = por %p219, %p220
    %p222 = scmp.ne.s32.totalorder %s214, %s216
    %p223 = scmp.eq.s32.totalorder %s24, 1
    %p224 = por %p222, %p223
    %p225 = scmp.ne.s32.totalorder %s216, %s217
    %p226 = scmp.eq.s32.totalorder %s24, 0
    %p227 = por %p225, %p226
    %p228 = scmp.ne.s32.totalorder %s216, %s217
    %p229 = scmp.eq.s32.totalorder %s25, 1
    %p230 = por %p228, %p229
    %p232 = scmp.ne.s32.totalorder %s217, %s231
    %p233 = scmp.eq.s32.totalorder %s25, 0
    %p234 = por %p232, %p233
    %s236 = sadd.s32 %s235, 1
    %p239 = scmp.eq.s32.totalorder %s19, 1
    %p240 = scmp.ne.s32.totalorder %s235, %s237
    %p241 = scmp.eq.s32.totalorder %s19, 0
    %p242 = por %p240, %p241
    %p243 = scmp.ne.s32.totalorder %s235, %s237
    %p244 = scmp.eq.s32.totalorder %s24, 1
    %p245 = por %p243, %p244
    %p246 = scmp.ne.s32.totalorder %s237, %s238
    %p247 = scmp.eq.s32.totalorder %s24, 0
    %p248 = por %p246, %p247
    %p249 = scmp.ne.s32.totalorder %s237, %s238
    %p250 = scmp.eq.s32.totalorder %s25, 1
    %p251 = por %p249, %p250
    %p253 = scmp.ne.s32.totalorder %s238, %s252
    %p254 = scmp.eq.s32.totalorder %s25, 0
    %p255 = por %p253, %p254
    %s257 = sadd.s32 %s256, 1
    %p260 = scmp.eq.s32.totalorder %s19, 1
    %p261 = scmp.ne.s32.totalorder %s256, %s258
    %p262 = scmp.eq.s32.totalorder %s19, 0
    %p263 = por %p261, %p262
    %p264 = scmp.ne.s32.totalorder %s256, %s258
    %p265 = scmp.eq.s32.totalorder %s24, 1
    %p266 = por %p264, %p265
    %p267 = scmp.ne.s32.totalorder %s258, %s259
    %p268 = scmp.eq.s32.totalorder %s24, 0
    %p269 = por %p267, %p268
    %p270 = scmp.ne.s32.totalorder %s258, %s259
    %p271 = scmp.eq.s32.totalorder %s25, 1
    %p272 = por %p270, %p271
    %p274 = scmp.ne.s32.totalorder %s259, %s273
    %p275 = scmp.eq.s32.totalorder %s25, 0
    %p276 = por %p274, %p275
    %s277 = ssub.s32 %s26, %s38
    %p278 = scmp.eq.s32.totalorder %s277, 0
    %s280 = sadd.s32 %s279, 1
    %s281 = scalar_select %p278, %s279, %s280
    %p284 = pneg %p278
    %p285 = scmp.eq.s32.totalorder %s19, 1
    %p286 = por %p284, %p285
    %p287 = scmp.ne.s32.totalorder %s279, %s282
    %p288 = scmp.eq.s32.totalorder %s19, 0
    %p289 = por %p287, %p288
    %p290 = scmp.ne.s32.totalorder %s279, %s282
    %p291 = scmp.eq.s32.totalorder %s24, 1
    %p292 = por %p290, %p291
    %p293 = scmp.ne.s32.totalorder %s282, %s283
    %p294 = scmp.eq.s32.totalorder %s24, 0
    %p295 = por %p293, %p294
    %p296 = scmp.ne.s32.totalorder %s282, %s283
    %p297 = scmp.eq.s32.totalorder %s25, 1
    %p298 = por %p296, %p297
    %p300 = scmp.ne.s32.totalorder %s283, %s299
    %p301 = scmp.eq.s32.totalorder %s25, 0
    %p302 = por %p300, %p301
    %s303 = ssub.s32 %s26, %s38
    %p304 = scmp.eq.s32.totalorder %s303, 0
    %s306 = sadd.s32 %s305, 1
    %s307 = scalar_select %p304, %s305, %s306
    %p310 = pneg %p304
    %p311 = scmp.eq.s32.totalorder %s19, 1
    %p312 = por %p310, %p311
    %p313 = scmp.ne.s32.totalorder %s305, %s308
    %p314 = scmp.eq.s32.totalorder %s19, 0
    %p315 = por %p313, %p314
    %p316 = scmp.ne.s32.totalorder %s305, %s308
    %p317 = scmp.eq.s32.totalorder %s24, 1
    %p318 = por %p316, %p317
    %p319 = scmp.ne.s32.totalorder %s308, %s309
    %p320 = scmp.eq.s32.totalorder %s24, 0
    %p321 = por %p319, %p320
    %p322 = scmp.ne.s32.totalorder %s308, %s309
    %p323 = scmp.eq.s32.totalorder %s25, 1
    %p324 = por %p322, %p323
    %p326 = scmp.ne.s32.totalorder %s309, %s325
    %p327 = scmp.eq.s32.totalorder %s25, 0
    %p328 = por %p326, %p327
    %p329 = scmp.le.s32.totalorder 1, %s19
    %p330 = scmp.lt.s32.totalorder %s19, 3
    %p331 = pnand %p329, %p330
    %p332 = pneg %p331
    // Predicated region
    $region9: #{tpu_custom_call.1} parent=5 // pred_check
      _
    $region10: #{tpu_custom_call.1} parent=5 // pred_check_branch
      %334 = sbr.rel (%p331) target = $region12
    $region11: #{tpu_custom_call.1} parent=5 // pred_region
      %s335 = ssub.s32 %s19, 1
      // Predicated region
      $region13: #{tpu_custom_call.1} parent=11 // pred_check
        %p336 = pneg %p80
      $region14: #{tpu_custom_call.1} parent=11 // pred_check_branch
        %338 = sbr.rel (%p336) target = $region16
      $region15: #{tpu_custom_call.1} parent=11 // pred_region
        _
      $region16: #{tpu_custom_call.1} parent=11 // pred_fallthru
        _
      // Predicated region
      $region17: #{tpu_custom_call.1} parent=11 // pred_check
        %p339 = pneg %p101
      $region18: #{tpu_custom_call.1} parent=11 // pred_check_branch
        %341 = sbr.rel (%p339) target = $region20
      $region19: #{tpu_custom_call.1} parent=11 // pred_region
        _
      $region20: #{tpu_custom_call.1} parent=11 // pred_fallthru
        _
      // Predicated region
      $region21: #{tpu_custom_call.1} parent=11 // pred_check
        %p342 = pneg %p122
      $region22: #{tpu_custom_call.1} parent=11 // pred_check_branch
        %344 = sbr.rel (%p342) target = $region24
      $region23: #{tpu_custom_call.1} parent=11 // pred_region
        _
      $region24: #{tpu_custom_call.1} parent=11 // pred_fallthru
        _
      // Predicated region
      $region25: #{tpu_custom_call.1} parent=11 // pred_check
        %p345 = pneg %p143
      $region26: #{tpu_custom_call.1} parent=11 // pred_check_branch
        %347 = sbr.rel (%p345) target = $region28
      $region27: #{tpu_custom_call.1} parent=11 // pred_region
        _
      $region28: #{tpu_custom_call.1} parent=11 // pred_fallthru
        _
      // Predicated region
      $region29: #{tpu_custom_call.1} parent=11 // pred_check
        %p348 = pneg %p164
      $region30: #{tpu_custom_call.1} parent=11 // pred_check_branch
        %350 = sbr.rel (%p348) target = $region32
      $region31: #{tpu_custom_call.1} parent=11 // pred_region
        _
      $region32: #{tpu_custom_call.1} parent=11 // pred_fallthru
        _
      // Predicated region
      $region33: #{tpu_custom_call.1} parent=11 // pred_check
        %p351 = pneg %p185
      $region34: #{tpu_custom_call.1} parent=11 // pred_check_branch
        %353 = sbr.rel (%p351) target = $region36
      $region35: #{tpu_custom_call.1} parent=11 // pred_region
        _
      $region36: #{tpu_custom_call.1} parent=11 // pred_fallthru
        _
      // Predicated region
      $region37: #{tpu_custom_call.1} parent=11 // pred_check
        %p354 = pneg %p206
      $region38: #{tpu_custom_call.1} parent=11 // pred_check_branch
        %356 = sbr.rel (%p354) target = $region40
      $region39: #{tpu_custom_call.1} parent=11 // pred_region
        _
      $region40: #{tpu_custom_call.1} parent=11 // pred_fallthru
        _
      // Predicated region
      $region41: #{tpu_custom_call.1} parent=11 // pred_check
        %p357 = pneg %p227
      $region42: #{tpu_custom_call.1} parent=11 // pred_check_branch
        %359 = sbr.rel (%p357) target = $region44
      $region43: #{tpu_custom_call.1} parent=11 // pred_region
        _
      $region44: #{tpu_custom_call.1} parent=11 // pred_fallthru
        _
      // Predicated region
      $region45: #{tpu_custom_call.1} parent=11 // pred_check
        %p360 = pneg %p248
      $region46: #{tpu_custom_call.1} parent=11 // pred_check_branch
        %362 = sbr.rel (%p360) target = $region48
      $region47: #{tpu_custom_call.1} parent=11 // pred_region
        _
      $region48: #{tpu_custom_call.1} parent=11 // pred_fallthru
        _
      // Predicated region
      $region49: #{tpu_custom_call.1} parent=11 // pred_check
        %p363 = pneg %p269
      $region50: #{tpu_custom_call.1} parent=11 // pred_check_branch
        %365 = sbr.rel (%p363) target = $region52
      $region51: #{tpu_custom_call.1} parent=11 // pred_region
        _
      $region52: #{tpu_custom_call.1} parent=11 // pred_fallthru
        _
    $region12: #{tpu_custom_call.1} parent=5 // pred_fallthru
      _
    %p366 = scmp.lt.s32.totalorder %s19, 2
    // Predicated region
    $region53: #{tpu_custom_call.1} parent=5 // pred_check
      %p367 = pneg %p366
    $region54: #{tpu_custom_call.1} parent=5 // pred_check_branch
      %369 = sbr.rel (%p367) target = $region56
    $region55: #{tpu_custom_call.1} parent=5 // pred_region
      // Predicated region
      $region57: #{tpu_custom_call.1} parent=55 // pred_check
        %p370 = pneg %p53
      $region58: #{tpu_custom_call.1} parent=55 // pred_check_branch
        %372 = sbr.rel (%p370) target = $region60
      $region59: #{tpu_custom_call.1} parent=55 // pred_region
        %p373 = scmp.lt.s32.totalorder %s26, 1
        %s374 = scalar_select %p373, %s26, 1
        %p375 = scmp.lt.s32.totalorder %s27, 0
        %s376 = scalar_select %p375, %s27, 0
        %s377 = sadd.s32 %s376, %s374
        %s378 = smul.addr %s377, 4
        %s379 = scalar_lea.vmem %s0, %s378
      $region60: #{tpu_custom_call.1} parent=55 // pred_fallthru
        _
    $region56: #{tpu_custom_call.1} parent=5 // pred_fallthru
      _
    %p380 = scmp.le.s32.totalorder 1, %s19
    %p381 = scmp.lt.s32.totalorder %s19, 3
    %p382 = pnand %p380, %p381
    %p383 = pneg %p382
    // Predicated region
    $region61: #{tpu_custom_call.1} parent=5 // pred_check
      _
    $region62: #{tpu_custom_call.1} parent=5 // pred_check_branch
      %385 = sbr.rel (%p382) target = $region64
    $region63: #{tpu_custom_call.1} parent=5 // pred_region
      %s386 = ssub.s32 %s19, 1
      %p387 = scmp.lt.s32.totalorder %s28, 1
      %s388 = scalar_select %p387, %s28, 1
      %p389 = scmp.lt.s32.totalorder %s29, 0
      %s390 = scalar_select %p389, %s29, 0
      %s391 = sadd.s32 %s390, %s388
      %s392 = smul.addr %s391, 4
      %s393 = scalar_lea.vmem %s0, %s392
      %p394 = pneg %p59
      %p395 = pneg %p56
      %p396 = pneg %p80
      %p397 = pneg %p77
      %p398 = pneg %p101
      %p399 = pneg %p98
      %p400 = pneg %p122
      %p401 = pneg %p119
      %p402 = pneg %p143
      %p403 = pneg %p140
      %p404 = pneg %p164
      %p405 = pneg %p161
      %p406 = pneg %p185
      %p407 = pneg %p182
      %p408 = pneg %p206
      %p409 = pneg %p203
      %p410 = pneg %p227
      %p411 = pneg %p224
      %p412 = pneg %p248
      %p413 = pneg %p245
      %p414 = pneg %p269
      %p415 = pneg %p266
      %p416 = pneg %p295
      %p417 = pneg %p292
      %p418 = scmp.lt.s32.totalorder %s28, 1
      %s419 = scalar_select %p418, %s28, 1
      %s420 = smul.addr %s419, 32
      %s421 = smul.addr %s420, 8
      %s422 = scalar_lea.vmem %s11, %s421
      %p423 = pneg %p321
      %p424 = pneg %p318
      %p425 = scmp.lt.s32.totalorder %s28, 1
      %s426 = scalar_select %p425, %s28, 1
      %s427 = smul.addr %s426, 32
      %s428 = smul.addr %s427, 8
      %s429 = scalar_lea.vmem %s12, %s428
      %p430 = scmp.lt.s32.totalorder %s28, 1
      %s431 = scalar_select %p430, %s28, 1
      %p432 = scmp.lt.s32.totalorder %s29, 0
      %s433 = scalar_select %p432, %s29, 0
      %s434 = sadd.s32 %s433, %s431
      %s435 = smul.addr %s434, 4
      %s436 = scalar_lea.vmem %s0, %s435
      %p437 = scmp.lt.s32.totalorder %s28, 1
      %s438 = scalar_select %p437, %s28, 1
      %s439 = smul.addr %s438, 32
      %s440 = smul.addr %s439, 8
      %s441 = scalar_lea.vmem %s11, %s440
      %p442 = scmp.lt.s32.totalorder %s28, 1
      %s443 = scalar_select %p442, %s28, 1
      %s444 = smul.addr %s443, 32
      %s445 = smul.addr %s444, 8
      %s446 = scalar_lea.vmem %s12, %s445
      %p448 = scmp.eq.s32.totalorder %s29, 0
      // Predicated region
      $region65: #{tpu_custom_call.1} parent=63 // pred_check
        %p449 = pneg %p448
      $region66: #{tpu_custom_call.1} parent=63 // pred_check_branch
        %451 = sbr.rel (%p449) target = $region68
      $region67: #{tpu_custom_call.1} parent=63 // pred_region
        %vm452 = vcmask 7168
        %453 = vst.msk [vmem:[%s441] sm:$0xff] %vm452, -inf
        %454 = vst.msk [vmem:[%s441 + $0x8] sm:$0xff] %vm452, -inf
        %455 = vst.msk [vmem:[%s441 + $0x10] sm:$0xff] %vm452, -inf
        %456 = vst.msk [vmem:[%s441 + $0x18] sm:$0xff] %vm452, -inf
        %457 = vst.msk [vmem:[%s441 + $0x20] sm:$0xff] %vm452, -inf
        %458 = vst.msk [vmem:[%s441 + $0x28] sm:$0xff] %vm452, -inf
        %459 = vst.msk [vmem:[%s441 + $0x30] sm:$0xff] %vm452, -inf
        %460 = vst.msk [vmem:[%s441 + $0x38] sm:$0xff] %vm452, -inf
        %461 = vst.msk [vmem:[%s441 + $0x40] sm:$0xff] %vm452, -inf
        %462 = vst.msk [vmem:[%s441 + $0x48] sm:$0xff] %vm452, -inf
        %463 = vst.msk [vmem:[%s441 + $0x50] sm:$0xff] %vm452, -inf
        %464 = vst.msk [vmem:[%s441 + $0x58] sm:$0xff] %vm452, -inf
        %465 = vst.msk [vmem:[%s441 + $0x60] sm:$0xff] %vm452, -inf
        %466 = vst.msk [vmem:[%s441 + $0x68] sm:$0xff] %vm452, -inf
        %467 = vst.msk [vmem:[%s441 + $0x70] sm:$0xff] %vm452, -inf
        %468 = vst.msk [vmem:[%s441 + $0x78] sm:$0xff] %vm452, -inf
        %469 = vst.msk [vmem:[%s441 + $0x80] sm:$0xff] %vm452, -inf
        %470 = vst.msk [vmem:[%s441 + $0x88] sm:$0xff] %vm452, -inf
        %471 = vst.msk [vmem:[%s441 + $0x90] sm:$0xff] %vm452, -inf
        %472 = vst.msk [vmem:[%s441 + $0x98] sm:$0xff] %vm452, -inf
        %473 = vst.msk [vmem:[%s441 + $0xa0] sm:$0xff] %vm452, -inf
        %474 = vst.msk [vmem:[%s441 + $0xa8] sm:$0xff] %vm452, -inf
        %475 = vst.msk [vmem:[%s441 + $0xb0] sm:$0xff] %vm452, -inf
        %476 = vst.msk [vmem:[%s441 + $0xb8] sm:$0xff] %vm452, -inf
        %477 = vst.msk [vmem:[%s441 + $0xc0] sm:$0xff] %vm452, -inf
        %478 = vst.msk [vmem:[%s441 + $0xc8] sm:$0xff] %vm452, -inf
        %479 = vst.msk [vmem:[%s441 + $0xd0] sm:$0xff] %vm452, -inf
        %480 = vst.msk [vmem:[%s441 + $0xd8] sm:$0xff] %vm452, -inf
        %481 = vst.msk [vmem:[%s441 + $0xe0] sm:$0xff] %vm452, -inf
        %482 = vst.msk [vmem:[%s441 + $0xe8] sm:$0xff] %vm452, -inf
        %483 = vst.msk [vmem:[%s441 + $0xf0] sm:$0xff] %vm452, -inf
        %484 = vst.msk [vmem:[%s441 + $0xf8] sm:$0xff] %vm452, -inf
        %485 = vst.msk [vmem:[%s446] sm:$0xff] %vm452, 0
        %486 = vst.msk [vmem:[%s446 + $0x8] sm:$0xff] %vm452, 0
        %487 = vst.msk [vmem:[%s446 + $0x10] sm:$0xff] %vm452, 0
        %488 = vst.msk [vmem:[%s446 + $0x18] sm:$0xff] %vm452, 0
        %489 = vst.msk [vmem:[%s446 + $0x20] sm:$0xff] %vm452, 0
        %490 = vst.msk [vmem:[%s446 + $0x28] sm:$0xff] %vm452, 0
        %491 = vst.msk [vmem:[%s446 + $0x30] sm:$0xff] %vm452, 0
        %492 = vst.msk [vmem:[%s446 + $0x38] sm:$0xff] %vm452, 0
        %493 = vst.msk [vmem:[%s446 + $0x40] sm:$0xff] %vm452, 0
        %494 = vst.msk [vmem:[%s446 + $0x48] sm:$0xff] %vm452, 0
        %495 = vst.msk [vmem:[%s446 + $0x50] sm:$0xff] %vm452, 0
        %496 = vst.msk [vmem:[%s446 + $0x58] sm:$0xff] %vm452, 0
        %497 = vst.msk [vmem:[%s446 + $0x60] sm:$0xff] %vm452, 0
        %498 = vst.msk [vmem:[%s446 + $0x68] sm:$0xff] %vm452, 0
        %499 = vst.msk [vmem:[%s446 + $0x70] sm:$0xff] %vm452, 0
        %500 = vst.msk [vmem:[%s446 + $0x78] sm:$0xff] %vm452, 0
        %501 = vst.msk [vmem:[%s446 + $0x80] sm:$0xff] %vm452, 0
        %502 = vst.msk [vmem:[%s446 + $0x88] sm:$0xff] %vm452, 0
        %503 = vst.msk [vmem:[%s446 + $0x90] sm:$0xff] %vm452, 0
        %504 = vst.msk [vmem:[%s446 + $0x98] sm:$0xff] %vm452, 0
        %505 = vst.msk [vmem:[%s446 + $0xa0] sm:$0xff] %vm452, 0
        %506 = vst.msk [vmem:[%s446 + $0xa8] sm:$0xff] %vm452, 0
        %507 = vst.msk [vmem:[%s446 + $0xb0] sm:$0xff] %vm452, 0
        %508 = vst.msk [vmem:[%s446 + $0xb8] sm:$0xff] %vm452, 0
        %509 = vst.msk [vmem:[%s446 + $0xc0] sm:$0xff] %vm452, 0
        %510 = vst.msk [vmem:[%s446 + $0xc8] sm:$0xff] %vm452, 0
        %511 = vst.msk [vmem:[%s446 + $0xd0] sm:$0xff] %vm452, 0
        %512 = vst.msk [vmem:[%s446 + $0xd8] sm:$0xff] %vm452, 0
        %513 = vst.msk [vmem:[%s446 + $0xe0] sm:$0xff] %vm452, 0
        %514 = vst.msk [vmem:[%s446 + $0xe8] sm:$0xff] %vm452, 0
        %515 = vst.msk [vmem:[%s446 + $0xf0] sm:$0xff] %vm452, 0
        %516 = vst.msk [vmem:[%s446 + $0xf8] sm:$0xff] %vm452, 0
      $region68: #{tpu_custom_call.1} parent=63 // pred_fallthru
        _
      %v517 = vld [vmem:[%s436] sm:$0xf]
      %v518 = vld [vmem:[%s1] sm:$0xff]
      %v519 = vld [vmem:[%s1 + $0x8] sm:$0xff]
      %v520 = vld [vmem:[%s1 + $0x10] sm:$0xff]
      %v521 = vld [vmem:[%s1 + $0x18] sm:$0xff]
      %v522 = vld [vmem:[%s1 + $0x20] sm:$0xff]
      %v523 = vld [vmem:[%s1 + $0x28] sm:$0xff]
      %v524 = vld [vmem:[%s1 + $0x30] sm:$0xff]
      %v525 = vld [vmem:[%s1 + $0x38] sm:$0xff]
      %527 = vset.pattern.permute.xlu0 0
      %528 = vperm.xlu0 %527, %v518
      %v529 = vpop.permute.xlu0 %528
      %532 = vset.pattern.permute.xlu0 0
      %533 = vperm.xlu0 %532, %v519
      %v534 = vpop.permute.xlu0 %533
      %537 = vset.pattern.permute.xlu0 0
      %538 = vperm.xlu0 %537, %v520
      %v539 = vpop.permute.xlu0 %538
      %542 = vset.pattern.permute.xlu0 0
      %543 = vperm.xlu0 %542, %v521
      %v544 = vpop.permute.xlu0 %543
      %547 = vset.pattern.permute.xlu0 0
      %548 = vperm.xlu0 %547, %v522
      %v549 = vpop.permute.xlu0 %548
      %552 = vset.pattern.permute.xlu0 0
      %553 = vperm.xlu0 %552, %v523
      %v554 = vpop.permute.xlu0 %553
      %557 = vset.pattern.permute.xlu0 0
      %558 = vperm.xlu0 %557, %v524
      %v559 = vpop.permute.xlu0 %558
      %562 = vset.pattern.permute.xlu0 0
      %563 = vperm.xlu0 %562, %v525
      %v564 = vpop.permute.xlu0 %563
      %v566 = vlaneseq
      %v567 = vshrl.u32 %v566, 7
      %v568 = vsub.s32 0, %v567
      %v569 = vrot.slane %v517, %v568
      %v570 = vmul.f32 %v529, %v569
      %v571 = vmul.f32 %v534, %v569
      %v572 = vmul.f32 %v539, %v569
      %v573 = vmul.f32 %v544, %v569
      %v574 = vmul.f32 %v549, %v569
      %v575 = vmul.f32 %v554, %v569
      %v576 = vmul.f32 %v559, %v569
      %v577 = vmul.f32 %v564, %v569
      %578 = vset.pattern.permute.xlu0 1
      %579 = vperm.xlu0 %578, %v518
      %v580 = vpop.permute.xlu0 %579
      %582 = vset.pattern.permute.xlu0 1
      %583 = vperm.xlu0 %582, %v519
      %v584 = vpop.permute.xlu0 %583
      %586 = vset.pattern.permute.xlu0 1
      %587 = vperm.xlu0 %586, %v520
      %v588 = vpop.permute.xlu0 %587
      %590 = vset.pattern.permute.xlu0 1
      %591 = vperm.xlu0 %590, %v521
      %v592 = vpop.permute.xlu0 %591
      %594 = vset.pattern.permute.xlu0 1
      %595 = vperm.xlu0 %594, %v522
      %v596 = vpop.permute.xlu0 %595
      %598 = vset.pattern.permute.xlu0 1
      %599 = vperm.xlu0 %598, %v523
      %v600 = vpop.permute.xlu0 %599
      %602 = vset.pattern.permute.xlu0 1
      %603 = vperm.xlu0 %602, %v524
      %v604 = vpop.permute.xlu0 %603
      %606 = vset.pattern.permute.xlu0 1
      %607 = vperm.xlu0 %606, %v525
      %v608 = vpop.permute.xlu0 %607
      %v610 = vlaneseq
      %v611 = vshrl.u32 %v610, 7
      %v612 = vsub.s32 1, %v611
      %v613 = vrot.slane %v517, %v612
      %v614 = vmul.f32 %v580, %v613
      %v615 = vmul.f32 %v584, %v613
      %v616 = vmul.f32 %v588, %v613
      %v617 = vmul.f32 %v592, %v613
      %v618 = vmul.f32 %v596, %v613
      %v619 = vmul.f32 %v600, %v613
      %v620 = vmul.f32 %v604, %v613
      %v621 = vmul.f32 %v608, %v613
      %v622 = vadd.f32 %v570, %v614
      %v623 = vadd.f32 %v571, %v615
      %v624 = vadd.f32 %v572, %v616
      %v625 = vadd.f32 %v573, %v617
      %v626 = vadd.f32 %v574, %v618
      %v627 = vadd.f32 %v575, %v619
      %v628 = vadd.f32 %v576, %v620
      %v629 = vadd.f32 %v577, %v621
      %630 = vset.pattern.permute.xlu0 2
      %631 = vperm.xlu0 %630, %v518
      %v632 = vpop.permute.xlu0 %631
      %634 = vset.pattern.permute.xlu0 2
      %635 = vperm.xlu0 %634, %v519
      %v636 = vpop.permute.xlu0 %635
      %638 = vset.pattern.permute.xlu0 2
      %639 = vperm.xlu0 %638, %v520
      %v640 = vpop.permute.xlu0 %639
      %642 = vset.pattern.permute.xlu0 2
      %643 = vperm.xlu0 %642, %v521
      %v644 = vpop.permute.xlu0 %643
      %646 = vset.pattern.permute.xlu0 2
      %647 = vperm.xlu0 %646, %v522
      %v648 = vpop.permute.xlu0 %647
      %650 = vset.pattern.permute.xlu0 2
      %651 = vperm.xlu0 %650, %v523
      %v652 = vpop.permute.xlu0 %651
      %654 = vset.pattern.permute.xlu0 2
      %655 = vperm.xlu0 %654, %v524
      %v656 = vpop.permute.xlu0 %655
      %658 = vset.pattern.permute.xlu0 2
      %659 = vperm.xlu0 %658, %v525
      %v660 = vpop.permute.xlu0 %659
      %v662 = vlaneseq
      %v663 = vshrl.u32 %v662, 7
      %v664 = vsub.s32 2, %v663
      %v665 = vrot.slane %v517, %v664
      %v666 = vmul.f32 %v632, %v665
      %v667 = vmul.f32 %v636, %v665
      %v668 = vmul.f32 %v640, %v665
      %v669 = vmul.f32 %v644, %v665
      %v670 = vmul.f32 %v648, %v665
      %v671 = vmul.f32 %v652, %v665
      %v672 = vmul.f32 %v656, %v665
      %v673 = vmul.f32 %v660, %v665
      %v674 = vadd.f32 %v622, %v666
      %v675 = vadd.f32 %v623, %v667
      %v676 = vadd.f32 %v624, %v668
      %v677 = vadd.f32 %v625, %v669
      %v678 = vadd.f32 %v626, %v670
      %v679 = vadd.f32 %v627, %v671
      %v680 = vadd.f32 %v628, %v672
      %v681 = vadd.f32 %v629, %v673
      %682 = vset.pattern.permute.xlu0 3
      %683 = vperm.xlu0 %682, %v518
      %v684 = vpop.permute.xlu0 %683
      %686 = vset.pattern.permute.xlu0 3
      %687 = vperm.xlu0 %686, %v519
      %v688 = vpop.permute.xlu0 %687
      %690 = vset.pattern.permute.xlu0 3
      %691 = vperm.xlu0 %690, %v520
      %v692 = vpop.permute.xlu0 %691
      %694 = vset.pattern.permute.xlu0 3
      %695 = vperm.xlu0 %694, %v521
      %v696 = vpop.permute.xlu0 %695
      %698 = vset.pattern.permute.xlu0 3
      %699 = vperm.xlu0 %698, %v522
      %v700 = vpop.permute.xlu0 %699
      %702 = vset.pattern.permute.xlu0 3
      %703 = vperm.xlu0 %702, %v523
      %v704 = vpop.permute.xlu0 %703
      %706 = vset.pattern.permute.xlu0 3
      %707 = vperm.xlu0 %706, %v524
      %v708 = vpop.permute.xlu0 %707
      %710 = vset.pattern.permute.xlu0 3
      %711 = vperm.xlu0 %710, %v525
      %v712 = vpop.permute.xlu0 %711
      %v714 = vlaneseq
      %v715 = vshrl.u32 %v714, 7
      %v716 = vsub.s32 3, %v715
      %v717 = vrot.slane %v517, %v716
      %v718 = vmul.f32 %v684, %v717
      %v719 = vmul.f32 %v688, %v717
      %v720 = vmul.f32 %v692, %v717
      %v721 = vmul.f32 %v696, %v717
      %v722 = vmul.f32 %v700, %v717
      %v723 = vmul.f32 %v704, %v717
      %v724 = vmul.f32 %v708, %v717
      %v725 = vmul.f32 %v712, %v717
      %v726 = vadd.f32 %v674, %v718
      %v727 = vadd.f32 %v675, %v719
      %v728 = vadd.f32 %v676, %v720
      %v729 = vadd.f32 %v677, %v721
      %v730 = vadd.f32 %v678, %v722
      %v731 = vadd.f32 %v679, %v723
      %v732 = vadd.f32 %v680, %v724
      %v733 = vadd.f32 %v681, %v725
      %v734 = vld [vmem:[%s2] sm:$0xff]
      %v735 = vld [vmem:[%s2 + $0x8] sm:$0xff]
      %v736 = vld [vmem:[%s2 + $0x10] sm:$0xff]
      %v737 = vld [vmem:[%s2 + $0x18] sm:$0xff]
      %v738 = vld [vmem:[%s2 + $0x20] sm:$0xff]
      %v739 = vld [vmem:[%s2 + $0x28] sm:$0xff]
      %v740 = vld [vmem:[%s2 + $0x30] sm:$0xff]
      %v741 = vld [vmem:[%s2 + $0x38] sm:$0xff]
      %743 = vset.pattern.permute.xlu0 0
      %744 = vperm.xlu0 %743, %v734
      %v745 = vpop.permute.xlu0 %744
      %748 = vset.pattern.permute.xlu0 0
      %749 = vperm.xlu0 %748, %v735
      %v750 = vpop.permute.xlu0 %749
      %753 = vset.pattern.permute.xlu0 0
      %754 = vperm.xlu0 %753, %v736
      %v755 = vpop.permute.xlu0 %754
      %758 = vset.pattern.permute.xlu0 0
      %759 = vperm.xlu0 %758, %v737
      %v760 = vpop.permute.xlu0 %759
      %763 = vset.pattern.permute.xlu0 0
      %764 = vperm.xlu0 %763, %v738
      %v765 = vpop.permute.xlu0 %764
      %768 = vset.pattern.permute.xlu0 0
      %769 = vperm.xlu0 %768, %v739
      %v770 = vpop.permute.xlu0 %769
      %773 = vset.pattern.permute.xlu0 0
      %774 = vperm.xlu0 %773, %v740
      %v775 = vpop.permute.xlu0 %774
      %778 = vset.pattern.permute.xlu0 0
      %779 = vperm.xlu0 %778, %v741
      %v780 = vpop.permute.xlu0 %779
      %v782 = vadd.f32 %v726, %v745
      %v783 = vadd.f32 %v727, %v750
      %v784 = vadd.f32 %v728, %v755
      %v785 = vadd.f32 %v729, %v760
      %v786 = vadd.f32 %v730, %v765
      %v787 = vadd.f32 %v731, %v770
      %v788 = vadd.f32 %v732, %v775
      %v789 = vadd.f32 %v733, %v780
      %v790 = vmax.f32 %v782, 0.0
      %v791 = vmax.f32 %v783, 0.0
      %v792 = vmax.f32 %v784, 0.0
      %v793 = vmax.f32 %v785, 0.0
      %v794 = vmax.f32 %v786, 0.0
      %v795 = vmax.f32 %v787, 0.0
      %v796 = vmax.f32 %v788, 0.0
      %v797 = vmax.f32 %v789, 0.0
      %v798 = vld [vmem:[%s3] sm:$0xf]
      %v799 = vld [vmem:[%s3 + $0x4] sm:$0xf]
      %v800 = vld [vmem:[%s3 + $0x8] sm:$0xf]
      %v801 = vld [vmem:[%s3 + $0xc] sm:$0xf]
      %v802 = vld [vmem:[%s3 + $0x10] sm:$0xf]
      %v803 = vld [vmem:[%s3 + $0x14] sm:$0xf]
      %v804 = vld [vmem:[%s3 + $0x18] sm:$0xf]
      %v805 = vld [vmem:[%s3 + $0x1c] sm:$0xf]
      %v806 = vpack.c.bf16 %v791, %v790
      %v807 = vpack.c.bf16 %v793, %v792
      %v808 = vpack.c.bf16 %v795, %v794
      %v809 = vpack.c.bf16 %v797, %v796
      %v810 = vld [vmem:[%s4] sm:$0xff]
      %v811 = vld [vmem:[%s4 + $0x8] sm:$0xff]
      %v812 = vld [vmem:[%s4 + $0x10] sm:$0xff]
      %v813 = vld [vmem:[%s4 + $0x18] sm:$0xff]
      %v814 = vld [vmem:[%s4 + $0x20] sm:$0xff]
      %v815 = vld [vmem:[%s4 + $0x28] sm:$0xff]
      %v816 = vld [vmem:[%s4 + $0x30] sm:$0xff]
      %v817 = vld [vmem:[%s4 + $0x38] sm:$0xff]
      %819 = vset.pattern.permute.xlu0 0
      %820 = vperm.xlu0 %819, %v810
      %v821 = vpop.permute.xlu0 %820
      %824 = vset.pattern.permute.xlu0 0
      %825 = vperm.xlu0 %824, %v811
      %v826 = vpop.permute.xlu0 %825
      %829 = vset.pattern.permute.xlu0 0
      %830 = vperm.xlu0 %829, %v812
      %v831 = vpop.permute.xlu0 %830
      %834 = vset.pattern.permute.xlu0 0
      %835 = vperm.xlu0 %834, %v813
      %v836 = vpop.permute.xlu0 %835
      %839 = vset.pattern.permute.xlu0 0
      %840 = vperm.xlu0 %839, %v814
      %v841 = vpop.permute.xlu0 %840
      %844 = vset.pattern.permute.xlu0 0
      %845 = vperm.xlu0 %844, %v815
      %v846 = vpop.permute.xlu0 %845
      %849 = vset.pattern.permute.xlu0 0
      %850 = vperm.xlu0 %849, %v816
      %v851 = vpop.permute.xlu0 %850
      %854 = vset.pattern.permute.xlu0 0
      %855 = vperm.xlu0 %854, %v817
      %v856 = vpop.permute.xlu0 %855
      %v866 = vunpack.c.l.b16 %v798
      %v867 = vunpack.c.l.b16 %v799
      %v868 = vunpack.c.l.b16 %v800
      %v869 = vunpack.c.l.b16 %v801
      %v870 = vunpack.c.l.b16 %v802
      %v871 = vunpack.c.l.b16 %v803
      %v872 = vunpack.c.l.b16 %v804
      %v873 = vunpack.c.l.b16 %v805
      %v874 = vpack.c.b16 %v867, %v866
      %v875 = vpack.c.b16 %v869, %v868
      %v876 = vpack.c.b16 %v871, %v870
      %v877 = vpack.c.b16 %v873, %v872
      %vm878 = vcmask 523264
      %v880 = vsel %vm878, %v874, 0
      %v883 = vsel %vm878, %v875, 0
      %v886 = vsel %vm878, %v876, 0
      %v889 = vsel %vm878, %v877, 0
      %891 = vmatprep.subr.bf16.mxu0 0
      %892 = vmatpush1.bf16.msra.mxu0 %v806
      %893 = vmatprep.subr.bf16.mxu0 0
      %894 = vmatpush1.bf16.msra.mxu0 %v807
      %895 = vmatprep.subr.bf16.mxu0 0
      %896 = vmatpush1.bf16.msra.mxu0 %v808
      %897 = vmatprep.subr.bf16.mxu0 0
      %898 = vmatpush1.bf16.msra.mxu0 %v809
      %899 = vmatprep.subr.bf16.mxu0 0
      %900 = vmatpush1.bf16.msra.mxu0 0
      %901 = vmatprep.subr.bf16.mxu0 0
      %902 = vmatpush1.bf16.msra.mxu0 0
      %903 = vmatprep.subr.bf16.mxu0 0
      %904 = vmatpush1.bf16.msra.mxu0 0
      %905 = vmatprep.subr.bf16.mxu0 0
      %906 = vmatpush1.bf16.msra.mxu0 0
      %907 = vmatprep.subr.bf16.mxu0 0
      %908 = vmatpush1.bf16.msra.mxu0 0
      %909 = vmatprep.subr.bf16.mxu0 0
      %910 = vmatpush1.bf16.msra.mxu0 0
      %911 = vmatprep.subr.bf16.mxu0 0
      %912 = vmatpush1.bf16.msra.mxu0 0
      %913 = vmatprep.subr.bf16.mxu0 0
      %914 = vmatpush1.bf16.msra.mxu0 0
      %915 = vmatprep.subr.bf16.mxu0 0
      %916 = vmatpush1.bf16.msra.mxu0 0
      %917 = vmatprep.subr.bf16.mxu0 0
      %918 = vmatpush1.bf16.msra.mxu0 0
      %919 = vmatprep.subr.bf16.mxu0 0
      %920 = vmatpush1.bf16.msra.mxu0 0
      %921 = vmatprep.subr.bf16.mxu0 0
      %922 = vmatpush1.bf16.msra.mxu0 0
      %923 = vmatprep.mubr.bf16.mxu0 0
      %924 = vmatmul.mubr.bf16.gmra.mrb[0].mxu0 %v880
      %v925 = vpop.f32.mrb[0].mxu0
      %v926 = vadd.f32 %v821, %v925
      %v927 = vpop.f32.mrb[0].mxu0
      %v928 = vpop.f32.mrb[0].mxu0
      %v929 = vadd.f32 %v826, %v928
      %v930 = vpop.f32.mrb[0].mxu0
      %931 = vmatprep.mubr.bf16.mxu0 0
      %932 = vmatmul.mubr.bf16.gmra.mrb[0].mxu0 %v883
      %v933 = vpop.f32.mrb[0].mxu0
      %v934 = vadd.f32 %v831, %v933
      %v935 = vpop.f32.mrb[0].mxu0
      %v936 = vpop.f32.mrb[0].mxu0
      %v937 = vadd.f32 %v836, %v936
      %v938 = vpop.f32.mrb[0].mxu0
      %939 = vmatprep.mubr.bf16.mxu0 0
      %940 = vmatmul.mubr.bf16.gmra.mrb[0].mxu0 %v886
      %v941 = vpop.f32.mrb[0].mxu0
      %v942 = vadd.f32 %v841, %v941
      %v943 = vpop.f32.mrb[0].mxu0
      %v944 = vpop.f32.mrb[0].mxu0
      %v945 = vadd.f32 %v846, %v944
      %v946 = vpop.f32.mrb[0].mxu0
      %947 = vmatprep.mubr.bf16.mxu0 0
      %948 = vmatmul.mubr.bf16.gmra.mrb[0].mxu0 %v889
      %v949 = vpop.f32.mrb[0].mxu0
      %v950 = vadd.f32 %v851, %v949
      %v951 = vpop.f32.mrb[0].mxu0
      %v952 = vpop.f32.mrb[0].mxu0
      %v953 = vadd.f32 %v856, %v952
      %v954 = vpop.f32.mrb[0].mxu0
      %955 = vdwg.mxu0
      %v956 = vmax.f32 %v926, 0.0
      %v957 = vmax.f32 %v929, 0.0
      %v958 = vmax.f32 %v934, 0.0
      %v959 = vmax.f32 %v937, 0.0
      %v960 = vmax.f32 %v942, 0.0
      %v961 = vmax.f32 %v945, 0.0
      %v962 = vmax.f32 %v950, 0.0
      %v963 = vmax.f32 %v953, 0.0
      %v964 = vld [vmem:[%s5] sm:$0xf]
      %v965 = vld [vmem:[%s5 + $0x4] sm:$0xf]
      %v966 = vld [vmem:[%s5 + $0x8] sm:$0xf]
      %v967 = vld [vmem:[%s5 + $0xc] sm:$0xf]
      %v968 = vld [vmem:[%s5 + $0x10] sm:$0xf]
      %v969 = vld [vmem:[%s5 + $0x14] sm:$0xf]
      %v970 = vld [vmem:[%s5 + $0x18] sm:$0xf]
      %v971 = vld [vmem:[%s5 + $0x1c] sm:$0xf]
      %v972 = vpack.c.bf16 %v957, %v956
      %v973 = vpack.c.bf16 %v959, %v958
      %v974 = vpack.c.bf16 %v961, %v960
      %v975 = vpack.c.bf16 %v963, %v962
      %v976 = vld [vmem:[%s6] sm:$0xff]
      %v977 = vld [vmem:[%s6 + $0x8] sm:$0xff]
      %v978 = vld [vmem:[%s6 + $0x10] sm:$0xff]
      %v979 = vld [vmem:[%s6 + $0x18] sm:$0xff]
      %v980 = vld [vmem:[%s6 + $0x20] sm:$0xff]
      %v981 = vld [vmem:[%s6 + $0x28] sm:$0xff]
      %v982 = vld [vmem:[%s6 + $0x30] sm:$0xff]
      %v983 = vld [vmem:[%s6 + $0x38] sm:$0xff]
      %985 = vset.pattern.permute.xlu0 0
      %986 = vperm.xlu0 %985, %v976
      %v987 = vpop.permute.xlu0 %986
      %990 = vset.pattern.permute.xlu0 0
      %991 = vperm.xlu0 %990, %v977
      %v992 = vpop.permute.xlu0 %991
      %995 = vset.pattern.permute.xlu0 0
      %996 = vperm.xlu0 %995, %v978
      %v997 = vpop.permute.xlu0 %996
      %1000 = vset.pattern.permute.xlu0 0
      %1001 = vperm.xlu0 %1000, %v979
      %v1002 = vpop.permute.xlu0 %1001
      %1005 = vset.pattern.permute.xlu0 0
      %1006 = vperm.xlu0 %1005, %v980
      %v1007 = vpop.permute.xlu0 %1006
      %1010 = vset.pattern.permute.xlu0 0
      %1011 = vperm.xlu0 %1010, %v981
      %v1012 = vpop.permute.xlu0 %1011
      %1015 = vset.pattern.permute.xlu0 0
      %1016 = vperm.xlu0 %1015, %v982
      %v1017 = vpop.permute.xlu0 %1016
      %1020 = vset.pattern.permute.xlu0 0
      %1021 = vperm.xlu0 %1020, %v983
      %v1022 = vpop.permute.xlu0 %1021
      %v1032 = vunpack.c.l.b16 %v964
      %v1033 = vunpack.c.l.b16 %v965
      %v1034 = vunpack.c.l.b16 %v966
      %v1035 = vunpack.c.l.b16 %v967
      %v1036 = vunpack.c.l.b16 %v968
      %v1037 = vunpack.c.l.b16 %v969
      %v1038 = vunpack.c.l.b16 %v970
      %v1039 = vunpack.c.l.b16 %v971
      %v1040 = vpack.c.b16 %v1033, %v1032
      %v1041 = vpack.c.b16 %v1035, %v1034
      %v1042 = vpack.c.b16 %v1037, %v1036
      %v1043 = vpack.c.b16 %v1039, %v1038
      %v1045 = vsel %vm878, %v1040, 0
      %v1048 = vsel %vm878, %v1041, 0
      %v1051 = vsel %vm878, %v1042, 0
      %v1054 = vsel %vm878, %v1043, 0
      %1056 = vmatprep.subr.bf16.mxu0 0
      %1057 = vmatpush1.bf16.msra.mxu0 %v972
      %1058 = vmatprep.subr.bf16.mxu0 0
      %1059 = vmatpush1.bf16.msra.mxu0 %v973
      %1060 = vmatprep.subr.bf16.mxu0 0
      %1061 = vmatpush1.bf16.msra.mxu0 %v974
      %1062 = vmatprep.subr.bf16.mxu0 0
      %1063 = vmatpush1.bf16.msra.mxu0 %v975
      %1064 = vmatprep.subr.bf16.mxu0 0
      %1065 = vmatpush1.bf16.msra.mxu0 0
      %1066 = vmatprep.subr.bf16.mxu0 0
      %1067 = vmatpush1.bf16.msra.mxu0 0
      %1068 = vmatprep.subr.bf16.mxu0 0
      %1069 = vmatpush1.bf16.msra.mxu0 0
      %1070 = vmatprep.subr.bf16.mxu0 0
      %1071 = vmatpush1.bf16.msra.mxu0 0
      %1072 = vmatprep.subr.bf16.mxu0 0
      %1073 = vmatpush1.bf16.msra.mxu0 0
      %1074 = vmatprep.subr.bf16.mxu0 0
      %1075 = vmatpush1.bf16.msra.mxu0 0
      %1076 = vmatprep.subr.bf16.mxu0 0
      %1077 = vmatpush1.bf16.msra.mxu0 0
      %1078 = vmatprep.subr.bf16.mxu0 0
      %1079 = vmatpush1.bf16.msra.mxu0 0
      %1080 = vmatprep.subr.bf16.mxu0 0
      %1081 = vmatpush1.bf16.msra.mxu0 0
      %1082 = vmatprep.subr.bf16.mxu0 0
      %1083 = vmatpush1.bf16.msra.mxu0 0
      %1084 = vmatprep.subr.bf16.mxu0 0
      %1085 = vmatpush1.bf16.msra.mxu0 0
      %1086 = vmatprep.subr.bf16.mxu0 0
      %1087 = vmatpush1.bf16.msra.mxu0 0
      %1088 = vmatprep.mubr.bf16.mxu0 0
      %1089 = vmatmul.mubr.bf16.gmra.mrb[0].mxu0 %v1045
      %v1090 = vpop.f32.mrb[0].mxu0
      %v1091 = vadd.f32 %v987, %v1090
      %v1092 = vpop.f32.mrb[0].mxu0
      %v1093 = vpop.f32.mrb[0].mxu0
      %v1094 = vadd.f32 %v992, %v1093
      %v1095 = vpop.f32.mrb[0].mxu0
      %1096 = vmatprep.mubr.bf16.mxu0 0
      %1097 = vmatmul.mubr.bf16.gmra.mrb[0].mxu0 %v1048
      %v1098 = vpop.f32.mrb[0].mxu0
      %v1099 = vadd.f32 %v997, %v1098
      %v1100 = vpop.f32.mrb[0].mxu0
      %v1101 = vpop.f32.mrb[0].mxu0
      %v1102 = vadd.f32 %v1002, %v1101
      %v1103 = vpop.f32.mrb[0].mxu0
      %1104 = vmatprep.mubr.bf16.mxu0 0
      %1105 = vmatmul.mubr.bf16.gmra.mrb[0].mxu0 %v1051
      %v1106 = vpop.f32.mrb[0].mxu0
      %v1107 = vadd.f32 %v1007, %v1106
      %v1108 = vpop.f32.mrb[0].mxu0
      %v1109 = vpop.f32.mrb[0].mxu0
      %v1110 = vadd.f32 %v1012, %v1109
      %v1111 = vpop.f32.mrb[0].mxu0
      %1112 = vmatprep.mubr.bf16.mxu0 0
      %1113 = vmatmul.mubr.bf16.gmra.mrb[0].mxu0 %v1054
      %v1114 = vpop.f32.mrb[0].mxu0
      %v1115 = vadd.f32 %v1017, %v1114
      %v1116 = vpop.f32.mrb[0].mxu0
      %v1117 = vpop.f32.mrb[0].mxu0
      %v1118 = vadd.f32 %v1022, %v1117
      %v1119 = vpop.f32.mrb[0].mxu0
      %1120 = vdwg.mxu0
      %v1121 = vmax.f32 %v1091, 0.0
      %v1122 = vmax.f32 %v1094, 0.0
      %v1123 = vmax.f32 %v1099, 0.0
      %v1124 = vmax.f32 %v1102, 0.0
      %v1125 = vmax.f32 %v1107, 0.0
      %v1126 = vmax.f32 %v1110, 0.0
      %v1127 = vmax.f32 %v1115, 0.0
      %v1128 = vmax.f32 %v1118, 0.0
      %v1129 = vld [vmem:[%s7] sm:$0xf]
      %v1130 = vld [vmem:[%s7 + $0x4] sm:$0xf]
      %v1131 = vld [vmem:[%s7 + $0x8] sm:$0xf]
      %v1132 = vld [vmem:[%s7 + $0xc] sm:$0xf]
      %v1133 = vld [vmem:[%s7 + $0x10] sm:$0xf]
      %v1134 = vld [vmem:[%s7 + $0x14] sm:$0xf]
      %v1135 = vld [vmem:[%s7 + $0x18] sm:$0xf]
      %v1136 = vld [vmem:[%s7 + $0x1c] sm:$0xf]
      %v1137 = vld [vmem:[%s7 + $0x20] sm:$0xf]
      %v1138 = vld [vmem:[%s7 + $0x24] sm:$0xf]
      %v1139 = vld [vmem:[%s7 + $0x28] sm:$0xf]
      %v1140 = vld [vmem:[%s7 + $0x2c] sm:$0xf]
      %v1141 = vld [vmem:[%s7 + $0x30] sm:$0xf]
      %v1142 = vld [vmem:[%s7 + $0x34] sm:$0xf]
      %v1143 = vld [vmem:[%s7 + $0x38] sm:$0xf]
      %v1144 = vld [vmem:[%s7 + $0x3c] sm:$0xf]
      %v1145 = vpack.c.bf16 %v1122, %v1121
      %v1146 = vpack.c.bf16 %v1124, %v1123
      %v1147 = vpack.c.bf16 %v1126, %v1125
      %v1148 = vpack.c.bf16 %v1128, %v1127
      %v1149 = vld [vmem:[%s8] sm:$0xff]
      %v1150 = vld [vmem:[%s8 + $0x8] sm:$0xff]
      %v1151 = vld [vmem:[%s8 + $0x10] sm:$0xff]
      %v1152 = vld [vmem:[%s8 + $0x18] sm:$0xff]
      %v1153 = vld [vmem:[%s8 + $0x20] sm:$0xff]
      %v1154 = vld [vmem:[%s8 + $0x28] sm:$0xff]
      %v1155 = vld [vmem:[%s8 + $0x30] sm:$0xff]
      %v1156 = vld [vmem:[%s8 + $0x38] sm:$0xff]
      %v1157 = vld [vmem:[%s8 + $0x40] sm:$0xff]
      %v1158 = vld [vmem:[%s8 + $0x48] sm:$0xff]
      %v1159 = vld [vmem:[%s8 + $0x50] sm:$0xff]
      %v1160 = vld [vmem:[%s8 + $0x58] sm:$0xff]
      %v1161 = vld [vmem:[%s8 + $0x60] sm:$0xff]
      %v1162 = vld [vmem:[%s8 + $0x68] sm:$0xff]
      %v1163 = vld [vmem:[%s8 + $0x70] sm:$0xff]
      %v1164 = vld [vmem:[%s8 + $0x78] sm:$0xff]
      %1166 = vset.pattern.permute.xlu0 0
      %1167 = vperm.xlu0 %1166, %v1149
      %v1168 = vpop.permute.xlu0 %1167
      %1171 = vset.pattern.permute.xlu0 0
      %1172 = vperm.xlu0 %1171, %v1150
      %v1173 = vpop.permute.xlu0 %1172
      %1176 = vset.pattern.permute.xlu0 0
      %1177 = vperm.xlu0 %1176, %v1151
      %v1178 = vpop.permute.xlu0 %1177
      %1181 = vset.pattern.permute.xlu0 0
      %1182 = vperm.xlu0 %1181, %v1152
      %v1183 = vpop.permute.xlu0 %1182
      %1186 = vset.pattern.permute.xlu0 0
      %1187 = vperm.xlu0 %1186, %v1153
      %v1188 = vpop.permute.xlu0 %1187
      %1191 = vset.pattern.permute.xlu0 0
      %1192 = vperm.xlu0 %1191, %v1154
      %v1193 = vpop.permute.xlu0 %1192
      %1196 = vset.pattern.permute.xlu0 0
      %1197 = vperm.xlu0 %1196, %v1155
      %v1198 = vpop.permute.xlu0 %1197
      %1201 = vset.pattern.permute.xlu0 0
      %1202 = vperm.xlu0 %1201, %v1156
      %v1203 = vpop.permute.xlu0 %1202
      %1206 = vset.pattern.permute.xlu0 0
      %1207 = vperm.xlu0 %1206, %v1157
      %v1208 = vpop.permute.xlu0 %1207
      %1211 = vset.pattern.permute.xlu0 0
      %1212 = vperm.xlu0 %1211, %v1158
      %v1213 = vpop.permute.xlu0 %1212
      %1216 = vset.pattern.permute.xlu0 0
      %1217 = vperm.xlu0 %1216, %v1159
      %v1218 = vpop.permute.xlu0 %1217
      %1221 = vset.pattern.permute.xlu0 0
      %1222 = vperm.xlu0 %1221, %v1160
      %v1223 = vpop.permute.xlu0 %1222
      %1226 = vset.pattern.permute.xlu0 0
      %1227 = vperm.xlu0 %1226, %v1161
      %v1228 = vpop.permute.xlu0 %1227
      %1231 = vset.pattern.permute.xlu0 0
      %1232 = vperm.xlu0 %1231, %v1162
      %v1233 = vpop.permute.xlu0 %1232
      %1236 = vset.pattern.permute.xlu0 0
      %1237 = vperm.xlu0 %1236, %v1163
      %v1238 = vpop.permute.xlu0 %1237
      %1241 = vset.pattern.permute.xlu0 0
      %1242 = vperm.xlu0 %1241, %v1164
      %v1243 = vpop.permute.xlu0 %1242
      %v1261 = vunpack.c.l.b16 %v1129
      %v1262 = vunpack.c.l.b16 %v1130
      %v1263 = vunpack.c.l.b16 %v1131
      %v1264 = vunpack.c.l.b16 %v1132
      %v1265 = vunpack.c.l.b16 %v1133
      %v1266 = vunpack.c.l.b16 %v1134
      %v1267 = vunpack.c.l.b16 %v1135
      %v1268 = vunpack.c.l.b16 %v1136
      %v1269 = vunpack.c.l.b16 %v1137
      %v1270 = vunpack.c.l.b16 %v1138
      %v1271 = vunpack.c.l.b16 %v1139
      %v1272 = vunpack.c.l.b16 %v1140
      %v1273 = vunpack.c.l.b16 %v1141
      %v1274 = vunpack.c.l.b16 %v1142
      %v1275 = vunpack.c.l.b16 %v1143
      %v1276 = vunpack.c.l.b16 %v1144
      %v1277 = vpack.c.b16 %v1262, %v1261
      %v1278 = vpack.c.b16 %v1264, %v1263
      %v1279 = vpack.c.b16 %v1266, %v1265
      %v1280 = vpack.c.b16 %v1268, %v1267
      %v1281 = vpack.c.b16 %v1270, %v1269
      %v1282 = vpack.c.b16 %v1272, %v1271
      %v1283 = vpack.c.b16 %v1274, %v1273
      %v1284 = vpack.c.b16 %v1276, %v1275
      %v1286 = vsel %vm878, %v1277, 0
      %v1289 = vsel %vm878, %v1278, 0
      %v1292 = vsel %vm878, %v1279, 0
      %v1295 = vsel %vm878, %v1280, 0
      %v1298 = vsel %vm878, %v1281, 0
      %v1301 = vsel %vm878, %v1282, 0
      %v1304 = vsel %vm878, %v1283, 0
      %v1307 = vsel %vm878, %v1284, 0
      %1309 = vmatprep.subr.bf16.mxu0 0
      %1310 = vmatpush1.bf16.msra.mxu0 %v1145
      %1311 = vmatprep.subr.bf16.mxu0 0
      %1312 = vmatpush1.bf16.msra.mxu0 %v1146
      %1313 = vmatprep.subr.bf16.mxu0 0
      %1314 = vmatpush1.bf16.msra.mxu0 %v1147
      %1315 = vmatprep.subr.bf16.mxu0 0
      %1316 = vmatpush1.bf16.msra.mxu0 %v1148
      %1317 = vmatprep.subr.bf16.mxu0 0
      %1318 = vmatpush1.bf16.msra.mxu0 0
      %1319 = vmatprep.subr.bf16.mxu0 0
      %1320 = vmatpush1.bf16.msra.mxu0 0
      %1321 = vmatprep.subr.bf16.mxu0 0
      %1322 = vmatpush1.bf16.msra.mxu0 0
      %1323 = vmatprep.subr.bf16.mxu0 0
      %1324 = vmatpush1.bf16.msra.mxu0 0
      %1325 = vmatprep.subr.bf16.mxu0 0
      %1326 = vmatpush1.bf16.msra.mxu0 0
      %1327 = vmatprep.subr.bf16.mxu0 0
      %1328 = vmatpush1.bf16.msra.mxu0 0
      %1329 = vmatprep.subr.bf16.mxu0 0
      %1330 = vmatpush1.bf16.msra.mxu0 0
      %1331 = vmatprep.subr.bf16.mxu0 0
      %1332 = vmatpush1.bf16.msra.mxu0 0
      %1333 = vmatprep.subr.bf16.mxu0 0
      %1334 = vmatpush1.bf16.msra.mxu0 0
      %1335 = vmatprep.subr.bf16.mxu0 0
      %1336 = vmatpush1.bf16.msra.mxu0 0
      %1337 = vmatprep.subr.bf16.mxu0 0
      %1338 = vmatpush1.bf16.msra.mxu0 0
      %1339 = vmatprep.subr.bf16.mxu0 0
      %1340 = vmatpush1.bf16.msra.mxu0 0
      %1341 = vmatprep.mubr.bf16.mxu0 0
      %1342 = vmatmul.mubr.bf16.gmra.mrb[0].mxu0 %v1286
      %v1343 = vpop.f32.mrb[0].mxu0
      %v1344 = vadd.f32 %v1168, %v1343
      %v1345 = vpop.f32.mrb[0].mxu0
      %v1346 = vpop.f32.mrb[0].mxu0
      %v1347 = vadd.f32 %v1173, %v1346
      %v1348 = vpop.f32.mrb[0].mxu0
      %1349 = vmatprep.mubr.bf16.mxu0 0
      %1350 = vmatmul.mubr.bf16.gmra.mrb[0].mxu0 %v1289
      %v1351 = vpop.f32.mrb[0].mxu0
      %v1352 = vadd.f32 %v1178, %v1351
      %v1353 = vpop.f32.mrb[0].mxu0
      %v1354 = vpop.f32.mrb[0].mxu0
      %v1355 = vadd.f32 %v1183, %v1354
      %v1356 = vpop.f32.mrb[0].mxu0
      %1357 = vmatprep.mubr.bf16.mxu0 0
      %1358 = vmatmul.mubr.bf16.gmra.mrb[0].mxu0 %v1292
      %v1359 = vpop.f32.mrb[0].mxu0
      %v1360 = vadd.f32 %v1188, %v1359
      %v1361 = vpop.f32.mrb[0].mxu0
      %v1362 = vpop.f32.mrb[0].mxu0
      %v1363 = vadd.f32 %v1193, %v1362
      %v1364 = vpop.f32.mrb[0].mxu0
      %1365 = vmatprep.mubr.bf16.mxu0 0
      %1366 = vmatmul.mubr.bf16.gmra.mrb[0].mxu0 %v1295
      %v1367 = vpop.f32.mrb[0].mxu0
      %v1368 = vadd.f32 %v1198, %v1367
      %v1369 = vpop.f32.mrb[0].mxu0
      %v1370 = vpop.f32.mrb[0].mxu0
      %v1371 = vadd.f32 %v1203, %v1370
      %v1372 = vpop.f32.mrb[0].mxu0
      %1373 = vmatprep.mubr.bf16.mxu0 0
      %1374 = vmatmul.mubr.bf16.gmra.mrb[0].mxu0 %v1298
      %v1375 = vpop.f32.mrb[0].mxu0
      %v1376 = vadd.f32 %v1208, %v1375
      %v1377 = vpop.f32.mrb[0].mxu0
      %v1378 = vpop.f32.mrb[0].mxu0
      %v1379 = vadd.f32 %v1213, %v1378
      %v1380 = vpop.f32.mrb[0].mxu0
      %1381 = vmatprep.mubr.bf16.mxu0 0
      %1382 = vmatmul.mubr.bf16.gmra.mrb[0].mxu0 %v1301
      %v1383 = vpop.f32.mrb[0].mxu0
      %v1384 = vadd.f32 %v1218, %v1383
      %v1385 = vpop.f32.mrb[0].mxu0
      %v1386 = vpop.f32.mrb[0].mxu0
      %v1387 = vadd.f32 %v1223, %v1386
      %v1388 = vpop.f32.mrb[0].mxu0
      %1389 = vmatprep.mubr.bf16.mxu0 0
      %1390 = vmatmul.mubr.bf16.gmra.mrb[0].mxu0 %v1304
      %v1391 = vpop.f32.mrb[0].mxu0
      %v1392 = vadd.f32 %v1228, %v1391
      %v1393 = vpop.f32.mrb[0].mxu0
      %v1394 = vpop.f32.mrb[0].mxu0
      %v1395 = vadd.f32 %v1233, %v1394
      %v1396 = vpop.f32.mrb[0].mxu0
      %1397 = vmatprep.mubr.bf16.mxu0 0
      %1398 = vmatmul.mubr.bf16.gmra.mrb[0].mxu0 %v1307
      %v1399 = vpop.f32.mrb[0].mxu0
      %v1400 = vadd.f32 %v1238, %v1399
      %v1401 = vpop.f32.mrb[0].mxu0
      %v1402 = vpop.f32.mrb[0].mxu0
      %v1403 = vadd.f32 %v1243, %v1402
      %v1404 = vpop.f32.mrb[0].mxu0
      %1405 = vdwg.mxu0
      %v1406 = vmax.f32 %v1344, 0.0
      %v1407 = vmax.f32 %v1347, 0.0
      %v1408 = vmax.f32 %v1352, 0.0
      %v1409 = vmax.f32 %v1355, 0.0
      %v1410 = vmax.f32 %v1360, 0.0
      %v1411 = vmax.f32 %v1363, 0.0
      %v1412 = vmax.f32 %v1368, 0.0
      %v1413 = vmax.f32 %v1371, 0.0
      %v1414 = vmax.f32 %v1376, 0.0
      %v1415 = vmax.f32 %v1379, 0.0
      %v1416 = vmax.f32 %v1384, 0.0
      %v1417 = vmax.f32 %v1387, 0.0
      %v1418 = vmax.f32 %v1392, 0.0
      %v1419 = vmax.f32 %v1395, 0.0
      %v1420 = vmax.f32 %v1400, 0.0
      %v1421 = vmax.f32 %v1403, 0.0
      %v1422 = vld [vmem:[%s9] sm:$0xf]
      %v1423 = vld [vmem:[%s9 + $0x4] sm:$0xf]
      %v1424 = vld [vmem:[%s9 + $0x8] sm:$0xf]
      %v1425 = vld [vmem:[%s9 + $0xc] sm:$0xf]
      %v1426 = vld [vmem:[%s9 + $0x10] sm:$0xf]
      %v1427 = vld [vmem:[%s9 + $0x14] sm:$0xf]
      %v1428 = vld [vmem:[%s9 + $0x18] sm:$0xf]
      %v1429 = vld [vmem:[%s9 + $0x1c] sm:$0xf]
      %v1430 = vld [vmem:[%s9 + $0x20] sm:$0xf]
      %v1431 = vld [vmem:[%s9 + $0x24] sm:$0xf]
      %v1432 = vld [vmem:[%s9 + $0x28] sm:$0xf]
      %v1433 = vld [vmem:[%s9 + $0x2c] sm:$0xf]
      %v1434 = vld [vmem:[%s9 + $0x30] sm:$0xf]
      %v1435 = vld [vmem:[%s9 + $0x34] sm:$0xf]
      %v1436 = vld [vmem:[%s9 + $0x38] sm:$0xf]
      %v1437 = vld [vmem:[%s9 + $0x3c] sm:$0xf]
      %v1438 = vld [vmem:[%s9 + $0x40] sm:$0xf]
      %v1439 = vld [vmem:[%s9 + $0x44] sm:$0xf]
      %v1440 = vld [vmem:[%s9 + $0x48] sm:$0xf]
      %v1441 = vld [vmem:[%s9 + $0x4c] sm:$0xf]
      %v1442 = vld [vmem:[%s9 + $0x50] sm:$0xf]
      %v1443 = vld [vmem:[%s9 + $0x54] sm:$0xf]
      %v1444 = vld [vmem:[%s9 + $0x58] sm:$0xf]
      %v1445 = vld [vmem:[%s9 + $0x5c] sm:$0xf]
      %v1446 = vld [vmem:[%s9 + $0x60] sm:$0xf]
      %v1447 = vld [vmem:[%s9 + $0x64] sm:$0xf]
      %v1448 = vld [vmem:[%s9 + $0x68] sm:$0xf]
      %v1449 = vld [vmem:[%s9 + $0x6c] sm:$0xf]
      %v1450 = vld [vmem:[%s9 + $0x70] sm:$0xf]
      %v1451 = vld [vmem:[%s9 + $0x74] sm:$0xf]
      %v1452 = vld [vmem:[%s9 + $0x78] sm:$0xf]
      %v1453 = vld [vmem:[%s9 + $0x7c] sm:$0xf]
      %v1454 = vpack.c.bf16 %v1407, %v1406
      %v1455 = vpack.c.bf16 %v1409, %v1408
      %v1456 = vpack.c.bf16 %v1411, %v1410
      %v1457 = vpack.c.bf16 %v1413, %v1412
      %v1458 = vpack.c.bf16 %v1415, %v1414
      %v1459 = vpack.c.bf16 %v1417, %v1416
      %v1460 = vpack.c.bf16 %v1419, %v1418
      %v1461 = vpack.c.bf16 %v1421, %v1420
      %v1462 = vld [vmem:[%s10] sm:$0xff]
      %v1463 = vld [vmem:[%s10 + $0x8] sm:$0xff]
      %v1464 = vld [vmem:[%s10 + $0x10] sm:$0xff]
      %v1465 = vld [vmem:[%s10 + $0x18] sm:$0xff]
      %v1466 = vld [vmem:[%s10 + $0x20] sm:$0xff]
      %v1467 = vld [vmem:[%s10 + $0x28] sm:$0xff]
      %v1468 = vld [vmem:[%s10 + $0x30] sm:$0xff]
      %v1469 = vld [vmem:[%s10 + $0x38] sm:$0xff]
      %v1470 = vld [vmem:[%s10 + $0x40] sm:$0xff]
      %v1471 = vld [vmem:[%s10 + $0x48] sm:$0xff]
      %v1472 = vld [vmem:[%s10 + $0x50] sm:$0xff]
      %v1473 = vld [vmem:[%s10 + $0x58] sm:$0xff]
      %v1474 = vld [vmem:[%s10 + $0x60] sm:$0xff]
      %v1475 = vld [vmem:[%s10 + $0x68] sm:$0xff]
      %v1476 = vld [vmem:[%s10 + $0x70] sm:$0xff]
      %v1477 = vld [vmem:[%s10 + $0x78] sm:$0xff]
      %v1478 = vld [vmem:[%s10 + $0x80] sm:$0xff]
      %v1479 = vld [vmem:[%s10 + $0x88] sm:$0xff]
      %v1480 = vld [vmem:[%s10 + $0x90] sm:$0xff]
      %v1481 = vld [vmem:[%s10 + $0x98] sm:$0xff]
      %v1482 = vld [vmem:[%s10 + $0xa0] sm:$0xff]
      %v1483 = vld [vmem:[%s10 + $0xa8] sm:$0xff]
      %v1484 = vld [vmem:[%s10 + $0xb0] sm:$0xff]
      %v1485 = vld [vmem:[%s10 + $0xb8] sm:$0xff]
      %v1486 = vld [vmem:[%s10 + $0xc0] sm:$0xff]
      %v1487 = vld [vmem:[%s10 + $0xc8] sm:$0xff]
      %v1488 = vld [vmem:[%s10 + $0xd0] sm:$0xff]
      %v1489 = vld [vmem:[%s10 + $0xd8] sm:$0xff]
      %v1490 = vld [vmem:[%s10 + $0xe0] sm:$0xff]
      %v1491 = vld [vmem:[%s10 + $0xe8] sm:$0xff]
      %v1492 = vld [vmem:[%s10 + $0xf0] sm:$0xff]
      %v1493 = vld [vmem:[%s10 + $0xf8] sm:$0xff]
      %1495 = vset.pattern.permute.xlu0 0
      %1496 = vperm.xlu0 %1495, %v1462
      %v1497 = vpop.permute.xlu0 %1496
      %1500 = vset.pattern.permute.xlu0 0
      %1501 = vperm.xlu0 %1500, %v1463
      %v1502 = vpop.permute.xlu0 %1501
      %1505 = vset.pattern.permute.xlu0 0
      %1506 = vperm.xlu0 %1505, %v1464
      %v1507 = vpop.permute.xlu0 %1506
      %1510 = vset.pattern.permute.xlu0 0
      %1511 = vperm.xlu0 %1510, %v1465
      %v1512 = vpop.permute.xlu0 %1511
      %1515 = vset.pattern.permute.xlu0 0
      %1516 = vperm.xlu0 %1515, %v1466
      %v1517 = vpop.permute.xlu0 %1516
      %1520 = vset.pattern.permute.xlu0 0
      %1521 = vperm.xlu0 %1520, %v1467
      %v1522 = vpop.permute.xlu0 %1521
      %1525 = vset.pattern.permute.xlu0 0
      %1526 = vperm.xlu0 %1525, %v1468
      %v1527 = vpop.permute.xlu0 %1526
      %1530 = vset.pattern.permute.xlu0 0
      %1531 = vperm.xlu0 %1530, %v1469
      %v1532 = vpop.permute.xlu0 %1531
      %1535 = vset.pattern.permute.xlu0 0
      %1536 = vperm.xlu0 %1535, %v1470
      %v1537 = vpop.permute.xlu0 %1536
      %1540 = vset.pattern.permute.xlu0 0
      %1541 = vperm.xlu0 %1540, %v1471
      %v1542 = vpop.permute.xlu0 %1541
      %1545 = vset.pattern.permute.xlu0 0
      %1546 = vperm.xlu0 %1545, %v1472
      %v1547 = vpop.permute.xlu0 %1546
      %1550 = vset.pattern.permute.xlu0 0
      %1551 = vperm.xlu0 %1550, %v1473
      %v1552 = vpop.permute.xlu0 %1551
      %1555 = vset.pattern.permute.xlu0 0
      %1556 = vperm.xlu0 %1555, %v1474
      %v1557 = vpop.permute.xlu0 %1556
      %1560 = vset.pattern.permute.xlu0 0
      %1561 = vperm.xlu0 %1560, %v1475
      %v1562 = vpop.permute.xlu0 %1561
      %1565 = vset.pattern.permute.xlu0 0
      %1566 = vperm.xlu0 %1565, %v1476
      %v1567 = vpop.permute.xlu0 %1566
      %1570 = vset.pattern.permute.xlu0 0
      %1571 = vperm.xlu0 %1570, %v1477
      %v1572 = vpop.permute.xlu0 %1571
      %1575 = vset.pattern.permute.xlu0 0
      %1576 = vperm.xlu0 %1575, %v1478
      %v1577 = vpop.permute.xlu0 %1576
      %1580 = vset.pattern.permute.xlu0 0
      %1581 = vperm.xlu0 %1580, %v1479
      %v1582 = vpop.permute.xlu0 %1581
      %1585 = vset.pattern.permute.xlu0 0
      %1586 = vperm.xlu0 %1585, %v1480
      %v1587 = vpop.permute.xlu0 %1586
      %1590 = vset.pattern.permute.xlu0 0
      %1591 = vperm.xlu0 %1590, %v1481
      %v1592 = vpop.permute.xlu0 %1591
      %1595 = vset.pattern.permute.xlu0 0
      %1596 = vperm.xlu0 %1595, %v1482
      %v1597 = vpop.permute.xlu0 %1596
      %1600 = vset.pattern.permute.xlu0 0
      %1601 = vperm.xlu0 %1600, %v1483
      %v1602 = vpop.permute.xlu0 %1601
      %1605 = vset.pattern.permute.xlu0 0
      %1606 = vperm.xlu0 %1605, %v1484
      %v1607 = vpop.permute.xlu0 %1606
      %1610 = vset.pattern.permute.xlu0 0
      %1611 = vperm.xlu0 %1610, %v1485
      %v1612 = vpop.permute.xlu0 %1611
      %1615 = vset.pattern.permute.xlu0 0
      %1616 = vperm.xlu0 %1615, %v1486
      %v1617 = vpop.permute.xlu0 %1616
      %1620 = vset.pattern.permute.xlu0 0
      %1621 = vperm.xlu0 %1620, %v1487
      %v1622 = vpop.permute.xlu0 %1621
      %1625 = vset.pattern.permute.xlu0 0
      %1626 = vperm.xlu0 %1625, %v1488
      %v1627 = vpop.permute.xlu0 %1626
      %1630 = vset.pattern.permute.xlu0 0
      %1631 = vperm.xlu0 %1630, %v1489
      %v1632 = vpop.permute.xlu0 %1631
      %1635 = vset.pattern.permute.xlu0 0
      %1636 = vperm.xlu0 %1635, %v1490
      %v1637 = vpop.permute.xlu0 %1636
      %1640 = vset.pattern.permute.xlu0 0
      %1641 = vperm.xlu0 %1640, %v1491
      %v1642 = vpop.permute.xlu0 %1641
      %1645 = vset.pattern.permute.xlu0 0
      %1646 = vperm.xlu0 %1645, %v1492
      %v1647 = vpop.permute.xlu0 %1646
      %1650 = vset.pattern.permute.xlu0 0
      %1651 = vperm.xlu0 %1650, %v1493
      %v1652 = vpop.permute.xlu0 %1651
      %v1686 = vunpack.c.l.b16 %v1422
      %v1687 = vunpack.c.l.b16 %v1423
      %v1688 = vunpack.c.l.b16 %v1424
      %v1689 = vunpack.c.l.b16 %v1425
      %v1690 = vunpack.c.l.b16 %v1426
      %v1691 = vunpack.c.l.b16 %v1427
      %v1692 = vunpack.c.l.b16 %v1428
      %v1693 = vunpack.c.l.b16 %v1429
      %v1694 = vunpack.c.l.b16 %v1430
      %v1695 = vunpack.c.l.b16 %v1431
      %v1696 = vunpack.c.l.b16 %v1432
      %v1697 = vunpack.c.l.b16 %v1433
      %v1698 = vunpack.c.l.b16 %v1434
      %v1699 = vunpack.c.l.b16 %v1435
      %v1700 = vunpack.c.l.b16 %v1436
      %v1701 = vunpack.c.l.b16 %v1437
      %v1702 = vunpack.c.l.b16 %v1438
      %v1703 = vunpack.c.l.b16 %v1439
      %v1704 = vunpack.c.l.b16 %v1440
      %v1705 = vunpack.c.l.b16 %v1441
      %v1706 = vunpack.c.l.b16 %v1442
      %v1707 = vunpack.c.l.b16 %v1443
      %v1708 = vunpack.c.l.b16 %v1444
      %v1709 = vunpack.c.l.b16 %v1445
      %v1710 = vunpack.c.l.b16 %v1446
      %v1711 = vunpack.c.l.b16 %v1447
      %v1712 = vunpack.c.l.b16 %v1448
      %v1713 = vunpack.c.l.b16 %v1449
      %v1714 = vunpack.c.l.b16 %v1450
      %v1715 = vunpack.c.l.b16 %v1451
      %v1716 = vunpack.c.l.b16 %v1452
      %v1717 = vunpack.c.l.b16 %v1453
      %v1718 = vpack.c.b16 %v1687, %v1686
      %v1719 = vpack.c.b16 %v1689, %v1688
      %v1720 = vpack.c.b16 %v1691, %v1690
      %v1721 = vpack.c.b16 %v1693, %v1692
      %v1722 = vpack.c.b16 %v1695, %v1694
      %v1723 = vpack.c.b16 %v1697, %v1696
      %v1724 = vpack.c.b16 %v1699, %v1698
      %v1725 = vpack.c.b16 %v1701, %v1700
      %v1726 = vpack.c.b16 %v1703, %v1702
      %v1727 = vpack.c.b16 %v1705, %v1704
      %v1728 = vpack.c.b16 %v1707, %v1706
      %v1729 = vpack.c.b16 %v1709, %v1708
      %v1730 = vpack.c.b16 %v1711, %v1710
      %v1731 = vpack.c.b16 %v1713, %v1712
      %v1732 = vpack.c.b16 %v1715, %v1714
      %v1733 = vpack.c.b16 %v1717, %v1716
      %1750 = vmatprep.subr.bf16.mxu0 0
      %1751 = vmatpush1.bf16.msra.mxu0 %v1454
      %1752 = vmatprep.subr.bf16.mxu0 0
      %1753 = vmatpush1.bf16.msra.mxu0 %v1455
      %1754 = vmatprep.subr.bf16.mxu0 0
      %1755 = vmatpush1.bf16.msra.mxu0 %v1456
      %1756 = vmatprep.subr.bf16.mxu0 0
      %1757 = vmatpush1.bf16.msra.mxu0 %v1457
      %1758 = vmatprep.subr.bf16.mxu0 0
      %1759 = vmatpush1.bf16.msra.mxu0 %v1458
      %1760 = vmatprep.subr.bf16.mxu0 0
      %1761 = vmatpush1.bf16.msra.mxu0 %v1459
      %1762 = vmatprep.subr.bf16.mxu0 0
      %1763 = vmatpush1.bf16.msra.mxu0 %v1460
      %1764 = vmatprep.subr.bf16.mxu0 0
      %1765 = vmatpush1.bf16.msra.mxu0 %v1461
      %1766 = vmatprep.subr.bf16.mxu0 0
      %1767 = vmatpush1.bf16.msra.mxu0 0
      %1768 = vmatprep.subr.bf16.mxu0 0
      %1769 = vmatpush1.bf16.msra.mxu0 0
      %1770 = vmatprep.subr.bf16.mxu0 0
      %1771 = vmatpush1.bf16.msra.mxu0 0
      %1772 = vmatprep.subr.bf16.mxu0 0
      %1773 = vmatpush1.bf16.msra.mxu0 0
      %1774 = vmatprep.subr.bf16.mxu0 0
      %1775 = vmatpush1.bf16.msra.mxu0 0
      %1776 = vmatprep.subr.bf16.mxu0 0
      %1777 = vmatpush1.bf16.msra.mxu0 0
      %1778 = vmatprep.subr.bf16.mxu0 0
      %1779 = vmatpush1.bf16.msra.mxu0 0
      %1780 = vmatprep.subr.bf16.mxu0 0
      %1781 = vmatpush1.bf16.msra.mxu0 0
      %1782 = vmatprep.mubr.bf16.mxu0 0
      %1783 = vmatmul.mubr.bf16.gmra.mrb[0].mxu0 %v1718
      %v1784 = vpop.f32.mrb[0].mxu0
      %v1785 = vadd.f32 %v1497, %v1784
      %v1786 = vpop.f32.mrb[0].mxu0
      %v1787 = vpop.f32.mrb[0].mxu0
      %v1788 = vadd.f32 %v1502, %v1787
      %v1789 = vpop.f32.mrb[0].mxu0
      %1790 = vmatprep.mubr.bf16.mxu0 0
      %1791 = vmatmul.mubr.bf16.gmra.mrb[0].mxu0 %v1719
      %v1792 = vpop.f32.mrb[0].mxu0
      %v1793 = vadd.f32 %v1507, %v1792
      %v1794 = vpop.f32.mrb[0].mxu0
      %v1795 = vpop.f32.mrb[0].mxu0
      %v1796 = vadd.f32 %v1512, %v1795
      %v1797 = vpop.f32.mrb[0].mxu0
      %1798 = vmatprep.mubr.bf16.mxu0 0
      %1799 = vmatmul.mubr.bf16.gmra.mrb[0].mxu0 %v1720
      %v1800 = vpop.f32.mrb[0].mxu0
      %v1801 = vadd.f32 %v1517, %v1800
      %v1802 = vpop.f32.mrb[0].mxu0
      %v1803 = vpop.f32.mrb[0].mxu0
      %v1804 = vadd.f32 %v1522, %v1803
      %v1805 = vpop.f32.mrb[0].mxu0
      %1806 = vmatprep.mubr.bf16.mxu0 0
      %1807 = vmatmul.mubr.bf16.gmra.mrb[0].mxu0 %v1721
      %v1808 = vpop.f32.mrb[0].mxu0
      %v1809 = vadd.f32 %v1527, %v1808
      %v1810 = vpop.f32.mrb[0].mxu0
      %v1811 = vpop.f32.mrb[0].mxu0
      %v1812 = vadd.f32 %v1532, %v1811
      %v1813 = vpop.f32.mrb[0].mxu0
      %1814 = vmatprep.mubr.bf16.mxu0 0
      %1815 = vmatmul.mubr.bf16.gmra.mrb[0].mxu0 %v1722
      %v1816 = vpop.f32.mrb[0].mxu0
      %v1817 = vadd.f32 %v1537, %v1816
      %v1818 = vpop.f32.mrb[0].mxu0
      %v1819 = vpop.f32.mrb[0].mxu0
      %v1820 = vadd.f32 %v1542, %v1819
      %v1821 = vpop.f32.mrb[0].mxu0
      %1822 = vmatprep.mubr.bf16.mxu0 0
      %1823 = vmatmul.mubr.bf16.gmra.mrb[0].mxu0 %v1723
      %v1824 = vpop.f32.mrb[0].mxu0
      %v1825 = vadd.f32 %v1547, %v1824
      %v1826 = vpop.f32.mrb[0].mxu0
      %v1827 = vpop.f32.mrb[0].mxu0
      %v1828 = vadd.f32 %v1552, %v1827
      %v1829 = vpop.f32.mrb[0].mxu0
      %1830 = vmatprep.mubr.bf16.mxu0 0
      %1831 = vmatmul.mubr.bf16.gmra.mrb[0].mxu0 %v1724
      %v1832 = vpop.f32.mrb[0].mxu0
      %v1833 = vadd.f32 %v1557, %v1832
      %v1834 = vpop.f32.mrb[0].mxu0
      %v1835 = vpop.f32.mrb[0].mxu0
      %v1836 = vadd.f32 %v1562, %v1835
      %v1837 = vpop.f32.mrb[0].mxu0
      %1838 = vmatprep.mubr.bf16.mxu0 0
      %1839 = vmatmul.mubr.bf16.gmra.mrb[0].mxu0 %v1725
      %v1840 = vpop.f32.mrb[0].mxu0
      %v1841 = vadd.f32 %v1567, %v1840
      %v1842 = vpop.f32.mrb[0].mxu0
      %v1843 = vpop.f32.mrb[0].mxu0
      %v1844 = vadd.f32 %v1572, %v1843
      %v1845 = vpop.f32.mrb[0].mxu0
      %1846 = vmatprep.mubr.bf16.mxu0 0
      %1847 = vmatmul.mubr.bf16.gmra.mrb[0].mxu0 %v1726
      %v1848 = vpop.f32.mrb[0].mxu0
      %v1849 = vadd.f32 %v1577, %v1848
      %v1850 = vpop.f32.mrb[0].mxu0
      %v1851 = vpop.f32.mrb[0].mxu0
      %v1852 = vadd.f32 %v1582, %v1851
      %v1853 = vpop.f32.mrb[0].mxu0
      %1854 = vmatprep.mubr.bf16.mxu0 0
      %1855 = vmatmul.mubr.bf16.gmra.mrb[0].mxu0 %v1727
      %v1856 = vpop.f32.mrb[0].mxu0
      %v1857 = vadd.f32 %v1587, %v1856
      %v1858 = vpop.f32.mrb[0].mxu0
      %v1859 = vpop.f32.mrb[0].mxu0
      %v1860 = vadd.f32 %v1592, %v1859
      %v1861 = vpop.f32.mrb[0].mxu0
      %1862 = vmatprep.mubr.bf16.mxu0 0
      %1863 = vmatmul.mubr.bf16.gmra.mrb[0].mxu0 %v1728
      %v1864 = vpop.f32.mrb[0].mxu0
      %v1865 = vadd.f32 %v1597, %v1864
      %v1866 = vpop.f32.mrb[0].mxu0
      %v1867 = vpop.f32.mrb[0].mxu0
      %v1868 = vadd.f32 %v1602, %v1867
      %v1869 = vpop.f32.mrb[0].mxu0
      %1870 = vmatprep.mubr.bf16.mxu0 0
      %1871 = vmatmul.mubr.bf16.gmra.mrb[0].mxu0 %v1729
      %v1872 = vpop.f32.mrb[0].mxu0
      %v1873 = vadd.f32 %v1607, %v1872
      %v1874 = vpop.f32.mrb[0].mxu0
      %v1875 = vpop.f32.mrb[0].mxu0
      %v1876 = vadd.f32 %v1612, %v1875
      %v1877 = vpop.f32.mrb[0].mxu0
      %1878 = vmatprep.mubr.bf16.mxu0 0
      %1879 = vmatmul.mubr.bf16.gmra.mrb[0].mxu0 %v1730
      %v1880 = vpop.f32.mrb[0].mxu0
      %v1881 = vadd.f32 %v1617, %v1880
      %v1882 = vpop.f32.mrb[0].mxu0
      %v1883 = vpop.f32.mrb[0].mxu0
      %v1884 = vadd.f32 %v1622, %v1883
      %v1885 = vpop.f32.mrb[0].mxu0
      %1886 = vmatprep.mubr.bf16.mxu0 0
      %1887 = vmatmul.mubr.bf16.gmra.mrb[0].mxu0 %v1731
      %v1888 = vpop.f32.mrb[0].mxu0
      %v1889 = vadd.f32 %v1627, %v1888
      %v1890 = vpop.f32.mrb[0].mxu0
      %v1891 = vpop.f32.mrb[0].mxu0
      %v1892 = vadd.f32 %v1632, %v1891
      %v1893 = vpop.f32.mrb[0].mxu0
      %1894 = vmatprep.mubr.bf16.mxu0 0
      %1895 = vmatmul.mubr.bf16.gmra.mrb[0].mxu0 %v1732
      %v1896 = vpop.f32.mrb[0].mxu0
      %v1897 = vadd.f32 %v1637, %v1896
      %v1898 = vpop.f32.mrb[0].mxu0
      %v1899 = vpop.f32.mrb[0].mxu0
      %v1900 = vadd.f32 %v1642, %v1899
      %v1901 = vpop.f32.mrb[0].mxu0
      %1902 = vmatprep.mubr.bf16.mxu0 0
      %1903 = vmatmul.mubr.bf16.gmra.mrb[0].mxu0 %v1733
      %v1904 = vpop.f32.mrb[0].mxu0
      %v1905 = vadd.f32 %v1647, %v1904
      %v1906 = vpop.f32.mrb[0].mxu0
      %v1907 = vpop.f32.mrb[0].mxu0
      %v1908 = vadd.f32 %v1652, %v1907
      %v1909 = vpop.f32.mrb[0].mxu0
      %1910 = vdwg.mxu0
      %v1911 = vmax.f32 %v1785, 0.0
      %v1912 = vmax.f32 %v1788, 0.0
      %v1913 = vmax.f32 %v1793, 0.0
      %v1914 = vmax.f32 %v1796, 0.0
      %v1915 = vmax.f32 %v1801, 0.0
      %v1916 = vmax.f32 %v1804, 0.0
      %v1917 = vmax.f32 %v1809, 0.0
      %v1918 = vmax.f32 %v1812, 0.0
      %v1919 = vmax.f32 %v1817, 0.0
      %v1920 = vmax.f32 %v1820, 0.0
      %v1921 = vmax.f32 %v1825, 0.0
      %v1922 = vmax.f32 %v1828, 0.0
      %v1923 = vmax.f32 %v1833, 0.0
      %v1924 = vmax.f32 %v1836, 0.0
      %v1925 = vmax.f32 %v1841, 0.0
      %v1926 = vmax.f32 %v1844, 0.0
      %v1927 = vmax.f32 %v1849, 0.0
      %v1928 = vmax.f32 %v1852, 0.0
      %v1929 = vmax.f32 %v1857, 0.0
      %v1930 = vmax.f32 %v1860, 0.0
      %v1931 = vmax.f32 %v1865, 0.0
      %v1932 = vmax.f32 %v1868, 0.0
      %v1933 = vmax.f32 %v1873, 0.0
      %v1934 = vmax.f32 %v1876, 0.0
      %v1935 = vmax.f32 %v1881, 0.0
      %v1936 = vmax.f32 %v1884, 0.0
      %v1937 = vmax.f32 %v1889, 0.0
      %v1938 = vmax.f32 %v1892, 0.0
      %v1939 = vmax.f32 %v1897, 0.0
      %v1940 = vmax.f32 %v1900, 0.0
      %v1941 = vmax.f32 %v1905, 0.0
      %v1942 = vmax.f32 %v1908, 0.0
      %v1943 = vlaneseq
      %v1944 = vand.u32 %v1943, 127
      %s1945 = smul.u32 %s29, 64
      %v1946 = vstv %s1945
      %v1947 = vadd.s32 %v1944, %v1946
      %v1948 = vsel %vm878, %v1911, -inf
      %1949 = vmax.xlane.f32.xlu0 %v1948
      %v1950 = vpop.xlane.xlu0 %1949
      %v1951 = vsel %vm878, %v1912, -inf
      %1952 = vmax.xlane.f32.xlu0 %v1951
      %v1953 = vpop.xlane.xlu0 %1952
      %v1954 = vsel %vm878, %v1913, -inf
      %1955 = vmax.xlane.f32.xlu0 %v1954
      %v1956 = vpop.xlane.xlu0 %1955
      %v1957 = vsel %vm878, %v1914, -inf
      %1958 = vmax.xlane.f32.xlu0 %v1957
      %v1959 = vpop.xlane.xlu0 %1958
      %v1960 = vsel %vm878, %v1915, -inf
      %1961 = vmax.xlane.f32.xlu0 %v1960
      %v1962 = vpop.xlane.xlu0 %1961
      %v1963 = vsel %vm878, %v1916, -inf
      %1964 = vmax.xlane.f32.xlu0 %v1963
      %v1965 = vpop.xlane.xlu0 %1964
      %v1966 = vsel %vm878, %v1917, -inf
      %1967 = vmax.xlane.f32.xlu0 %v1966
      %v1968 = vpop.xlane.xlu0 %1967
      %v1969 = vsel %vm878, %v1918, -inf
      %1970 = vmax.xlane.f32.xlu0 %v1969
      %v1971 = vpop.xlane.xlu0 %1970
      %v1972 = vsel %vm878, %v1919, -inf
      %1973 = vmax.xlane.f32.xlu0 %v1972
      %v1974 = vpop.xlane.xlu0 %1973
      %v1975 = vsel %vm878, %v1920, -inf
      %1976 = vmax.xlane.f32.xlu0 %v1975
      %v1977 = vpop.xlane.xlu0 %1976
      %v1978 = vsel %vm878, %v1921, -inf
      %1979 = vmax.xlane.f32.xlu0 %v1978
      %v1980 = vpop.xlane.xlu0 %1979
      %v1981 = vsel %vm878, %v1922, -inf
      %1982 = vmax.xlane.f32.xlu0 %v1981
      %v1983 = vpop.xlane.xlu0 %1982
      %v1984 = vsel %vm878, %v1923, -inf
      %1985 = vmax.xlane.f32.xlu0 %v1984
      %v1986 = vpop.xlane.xlu0 %1985
      %v1987 = vsel %vm878, %v1924, -inf
      %1988 = vmax.xlane.f32.xlu0 %v1987
      %v1989 = vpop.xlane.xlu0 %1988
      %v1990 = vsel %vm878, %v1925, -inf
      %1991 = vmax.xlane.f32.xlu0 %v1990
      %v1992 = vpop.xlane.xlu0 %1991
      %v1993 = vsel %vm878, %v1926, -inf
      %1994 = vmax.xlane.f32.xlu0 %v1993
      %v1995 = vpop.xlane.xlu0 %1994
      %v1996 = vsel %vm878, %v1927, -inf
      %1997 = vmax.xlane.f32.xlu0 %v1996
      %v1998 = vpop.xlane.xlu0 %1997
      %v1999 = vsel %vm878, %v1928, -inf
      %2000 = vmax.xlane.f32.xlu0 %v1999
      %v2001 = vpop.xlane.xlu0 %2000
      %v2002 = vsel %vm878, %v1929, -inf
      %2003 = vmax.xlane.f32.xlu0 %v2002
      %v2004 = vpop.xlane.xlu0 %2003
      %v2005 = vsel %vm878, %v1930, -inf
      %2006 = vmax.xlane.f32.xlu0 %v2005
      %v2007 = vpop.xlane.xlu0 %2006
      %v2008 = vsel %vm878, %v1931, -inf
      %2009 = vmax.xlane.f32.xlu0 %v2008
      %v2010 = vpop.xlane.xlu0 %2009
      %v2011 = vsel %vm878, %v1932, -inf
      %2012 = vmax.xlane.f32.xlu0 %v2011
      %v2013 = vpop.xlane.xlu0 %2012
      %v2014 = vsel %vm878, %v1933, -inf
      %2015 = vmax.xlane.f32.xlu0 %v2014
      %v2016 = vpop.xlane.xlu0 %2015
      %v2017 = vsel %vm878, %v1934, -inf
      %2018 = vmax.xlane.f32.xlu0 %v2017
      %v2019 = vpop.xlane.xlu0 %2018
      %v2020 = vsel %vm878, %v1935, -inf
      %2021 = vmax.xlane.f32.xlu0 %v2020
      %v2022 = vpop.xlane.xlu0 %2021
      %v2023 = vsel %vm878, %v1936, -inf
      %2024 = vmax.xlane.f32.xlu0 %v2023
      %v2025 = vpop.xlane.xlu0 %2024
      %v2026 = vsel %vm878, %v1937, -inf
      %2027 = vmax.xlane.f32.xlu0 %v2026
      %v2028 = vpop.xlane.xlu0 %2027
      %v2029 = vsel %vm878, %v1938, -inf
      %2030 = vmax.xlane.f32.xlu0 %v2029
      %v2031 = vpop.xlane.xlu0 %2030
      %v2032 = vsel %vm878, %v1939, -inf
      %2033 = vmax.xlane.f32.xlu0 %v2032
      %v2034 = vpop.xlane.xlu0 %2033
      %v2035 = vsel %vm878, %v1940, -inf
      %2036 = vmax.xlane.f32.xlu0 %v2035
      %v2037 = vpop.xlane.xlu0 %2036
      %v2038 = vsel %vm878, %v1941, -inf
      %2039 = vmax.xlane.f32.xlu0 %v2038
      %v2040 = vpop.xlane.xlu0 %2039
      %v2041 = vsel %vm878, %v1942, -inf
      %2042 = vmax.xlane.f32.xlu0 %v2041
      %v2043 = vpop.xlane.xlu0 %2042
      %v2044 = vld [vmem:[%s441] sm:$0xff]
      %v2045 = vld [vmem:[%s441 + $0x8] sm:$0xff]
      %v2046 = vld [vmem:[%s441 + $0x10] sm:$0xff]
      %v2047 = vld [vmem:[%s441 + $0x18] sm:$0xff]
      %v2048 = vld [vmem:[%s441 + $0x20] sm:$0xff]
      %v2049 = vld [vmem:[%s441 + $0x28] sm:$0xff]
      %v2050 = vld [vmem:[%s441 + $0x30] sm:$0xff]
      %v2051 = vld [vmem:[%s441 + $0x38] sm:$0xff]
      %v2052 = vld [vmem:[%s441 + $0x40] sm:$0xff]
      %v2053 = vld [vmem:[%s441 + $0x48] sm:$0xff]
      %v2054 = vld [vmem:[%s441 + $0x50] sm:$0xff]
      %v2055 = vld [vmem:[%s441 + $0x58] sm:$0xff]
      %v2056 = vld [vmem:[%s441 + $0x60] sm:$0xff]
      %v2057 = vld [vmem:[%s441 + $0x68] sm:$0xff]
      %v2058 = vld [vmem:[%s441 + $0x70] sm:$0xff]
      %v2059 = vld [vmem:[%s441 + $0x78] sm:$0xff]
      %v2060 = vld [vmem:[%s441 + $0x80] sm:$0xff]
      %v2061 = vld [vmem:[%s441 + $0x88] sm:$0xff]
      %v2062 = vld [vmem:[%s441 + $0x90] sm:$0xff]
      %v2063 = vld [vmem:[%s441 + $0x98] sm:$0xff]
      %v2064 = vld [vmem:[%s441 + $0xa0] sm:$0xff]
      %v2065 = vld [vmem:[%s441 + $0xa8] sm:$0xff]
      %v2066 = vld [vmem:[%s441 + $0xb0] sm:$0xff]
      %v2067 = vld [vmem:[%s441 + $0xb8] sm:$0xff]
      %v2068 = vld [vmem:[%s441 + $0xc0] sm:$0xff]
      %v2069 = vld [vmem:[%s441 + $0xc8] sm:$0xff]
      %v2070 = vld [vmem:[%s441 + $0xd0] sm:$0xff]
      %v2071 = vld [vmem:[%s441 + $0xd8] sm:$0xff]
      %v2072 = vld [vmem:[%s441 + $0xe0] sm:$0xff]
      %v2073 = vld [vmem:[%s441 + $0xe8] sm:$0xff]
      %v2074 = vld [vmem:[%s441 + $0xf0] sm:$0xff]
      %v2075 = vld [vmem:[%s441 + $0xf8] sm:$0xff]
      %vm2076 = vcmp.gt.f32.partialorder %v1950, %v2044
      %vm2077 = vcmp.gt.f32.partialorder %v1953, %v2045
      %vm2078 = vcmp.gt.f32.partialorder %v1956, %v2046
      %vm2079 = vcmp.gt.f32.partialorder %v1959, %v2047
      %vm2080 = vcmp.gt.f32.partialorder %v1962, %v2048
      %vm2081 = vcmp.gt.f32.partialorder %v1965, %v2049
      %vm2082 = vcmp.gt.f32.partialorder %v1968, %v2050
      %vm2083 = vcmp.gt.f32.partialorder %v1971, %v2051
      %vm2084 = vcmp.gt.f32.partialorder %v1974, %v2052
      %vm2085 = vcmp.gt.f32.partialorder %v1977, %v2053
      %vm2086 = vcmp.gt.f32.partialorder %v1980, %v2054
      %vm2087 = vcmp.gt.f32.partialorder %v1983, %v2055
      %vm2088 = vcmp.gt.f32.partialorder %v1986, %v2056
      %vm2089 = vcmp.gt.f32.partialorder %v1989, %v2057
      %vm2090 = vcmp.gt.f32.partialorder %v1992, %v2058
      %vm2091 = vcmp.gt.f32.partialorder %v1995, %v2059
      %vm2092 = vcmp.gt.f32.partialorder %v1998, %v2060
      %vm2093 = vcmp.gt.f32.partialorder %v2001, %v2061
      %vm2094 = vcmp.gt.f32.partialorder %v2004, %v2062
      %vm2095 = vcmp.gt.f32.partialorder %v2007, %v2063
      %vm2096 = vcmp.gt.f32.partialorder %v2010, %v2064
      %vm2097 = vcmp.gt.f32.partialorder %v2013, %v2065
      %vm2098 = vcmp.gt.f32.partialorder %v2016, %v2066
      %vm2099 = vcmp.gt.f32.partialorder %v2019, %v2067
      %vm2100 = vcmp.gt.f32.partialorder %v2022, %v2068
      %vm2101 = vcmp.gt.f32.partialorder %v2025, %v2069
      %vm2102 = vcmp.gt.f32.partialorder %v2028, %v2070
      %vm2103 = vcmp.gt.f32.partialorder %v2031, %v2071
      %vm2104 = vcmp.gt.f32.partialorder %v2034, %v2072
      %vm2105 = vcmp.gt.f32.partialorder %v2037, %v2073
      %vm2106 = vcmp.gt.f32.partialorder %v2040, %v2074
      %vm2107 = vcmp.gt.f32.partialorder %v2043, %v2075
      %v2108 = vcvt.s32.f32 %v1947
      %vm2109 = vcmp.eq.f32.partialorder %v1911, %v1950
      %vm2110 = vcmp.eq.f32.partialorder %v1912, %v1953
      %vm2111 = vcmp.eq.f32.partialorder %v1913, %v1956
      %vm2112 = vcmp.eq.f32.partialorder %v1914, %v1959
      %vm2113 = vcmp.eq.f32.partialorder %v1915, %v1962
      %vm2114 = vcmp.eq.f32.partialorder %v1916, %v1965
      %vm2115 = vcmp.eq.f32.partialorder %v1917, %v1968
      %vm2116 = vcmp.eq.f32.partialorder %v1918, %v1971
      %vm2117 = vcmp.eq.f32.partialorder %v1919, %v1974
      %vm2118 = vcmp.eq.f32.partialorder %v1920, %v1977
      %vm2119 = vcmp.eq.f32.partialorder %v1921, %v1980
      %vm2120 = vcmp.eq.f32.partialorder %v1922, %v1983
      %vm2121 = vcmp.eq.f32.partialorder %v1923, %v1986
      %vm2122 = vcmp.eq.f32.partialorder %v1924, %v1989
      %vm2123 = vcmp.eq.f32.partialorder %v1925, %v1992
      %vm2124 = vcmp.eq.f32.partialorder %v1926, %v1995
      %vm2125 = vcmp.eq.f32.partialorder %v1927, %v1998
      %vm2126 = vcmp.eq.f32.partialorder %v1928, %v2001
      %vm2127 = vcmp.eq.f32.partialorder %v1929, %v2004
      %vm2128 = vcmp.eq.f32.partialorder %v1930, %v2007
      %vm2129 = vcmp.eq.f32.partialorder %v1931, %v2010
      %vm2130 = vcmp.eq.f32.partialorder %v1932, %v2013
      %vm2131 = vcmp.eq.f32.partialorder %v1933, %v2016
      %vm2132 = vcmp.eq.f32.partialorder %v1934, %v2019
      %vm2133 = vcmp.eq.f32.partialorder %v1935, %v2022
      %vm2134 = vcmp.eq.f32.partialorder %v1936, %v2025
      %vm2135 = vcmp.eq.f32.partialorder %v1937, %v2028
      %vm2136 = vcmp.eq.f32.partialorder %v1938, %v2031
      %vm2137 = vcmp.eq.f32.partialorder %v1939, %v2034
      %vm2138 = vcmp.eq.f32.partialorder %v1940, %v2037
      %vm2139 = vcmp.eq.f32.partialorder %v1941, %v2040
      %vm2140 = vcmp.eq.f32.partialorder %v1942, %v2043
      %v2141 = vsel %vm2109, %v2108, 3e+38
      %v2142 = vsel %vm2110, %v2108, 3e+38
      %v2143 = vsel %vm2111, %v2108, 3e+38
      %v2144 = vsel %vm2112, %v2108, 3e+38
      %v2145 = vsel %vm2113, %v2108, 3e+38
      %v2146 = vsel %vm2114, %v2108, 3e+38
      %v2147 = vsel %vm2115, %v2108, 3e+38
      %v2148 = vsel %vm2116, %v2108, 3e+38
      %v2149 = vsel %vm2117, %v2108, 3e+38
      %v2150 = vsel %vm2118, %v2108, 3e+38
      %v2151 = vsel %vm2119, %v2108, 3e+38
      %v2152 = vsel %vm2120, %v2108, 3e+38
      %v2153 = vsel %vm2121, %v2108, 3e+38
      %v2154 = vsel %vm2122, %v2108, 3e+38
      %v2155 = vsel %vm2123, %v2108, 3e+38
      %v2156 = vsel %vm2124, %v2108, 3e+38
      %v2157 = vsel %vm2125, %v2108, 3e+38
      %v2158 = vsel %vm2126, %v2108, 3e+38
      %v2159 = vsel %vm2127, %v2108, 3e+38
      %v2160 = vsel %vm2128, %v2108, 3e+38
      %v2161 = vsel %vm2129, %v2108, 3e+38
      %v2162 = vsel %vm2130, %v2108, 3e+38
      %v2163 = vsel %vm2131, %v2108, 3e+38
      %v2164 = vsel %vm2132, %v2108, 3e+38
      %v2165 = vsel %vm2133, %v2108, 3e+38
      %v2166 = vsel %vm2134, %v2108, 3e+38
      %v2167 = vsel %vm2135, %v2108, 3e+38
      %v2168 = vsel %vm2136, %v2108, 3e+38
      %v2169 = vsel %vm2137, %v2108, 3e+38
      %v2170 = vsel %vm2138, %v2108, 3e+38
      %v2171 = vsel %vm2139, %v2108, 3e+38
      %v2172 = vsel %vm2140, %v2108, 3e+38
      %v2173 = vsel %vm878, %v2141, inf
      %2174 = vmin.xlane.f32.xlu0 %v2173
      %v2175 = vpop.xlane.xlu0 %2174
      %v2176 = vsel %vm878, %v2142, inf
      %2177 = vmin.xlane.f32.xlu0 %v2176
      %v2178 = vpop.xlane.xlu0 %2177
      %v2179 = vsel %vm878, %v2143, inf
      %2180 = vmin.xlane.f32.xlu0 %v2179
      %v2181 = vpop.xlane.xlu0 %2180
      %v2182 = vsel %vm878, %v2144, inf
      %2183 = vmin.xlane.f32.xlu0 %v2182
      %v2184 = vpop.xlane.xlu0 %2183
      %v2185 = vsel %vm878, %v2145, inf
      %2186 = vmin.xlane.f32.xlu0 %v2185
      %v2187 = vpop.xlane.xlu0 %2186
      %v2188 = vsel %vm878, %v2146, inf
      %2189 = vmin.xlane.f32.xlu0 %v2188
      %v2190 = vpop.xlane.xlu0 %2189
      %v2191 = vsel %vm878, %v2147, inf
      %2192 = vmin.xlane.f32.xlu0 %v2191
      %v2193 = vpop.xlane.xlu0 %2192
      %v2194 = vsel %vm878, %v2148, inf
      %2195 = vmin.xlane.f32.xlu0 %v2194
      %v2196 = vpop.xlane.xlu0 %2195
      %v2197 = vsel %vm878, %v2149, inf
      %2198 = vmin.xlane.f32.xlu0 %v2197
      %v2199 = vpop.xlane.xlu0 %2198
      %v2200 = vsel %vm878, %v2150, inf
      %2201 = vmin.xlane.f32.xlu0 %v2200
      %v2202 = vpop.xlane.xlu0 %2201
      %v2203 = vsel %vm878, %v2151, inf
      %2204 = vmin.xlane.f32.xlu0 %v2203
      %v2205 = vpop.xlane.xlu0 %2204
      %v2206 = vsel %vm878, %v2152, inf
      %2207 = vmin.xlane.f32.xlu0 %v2206
      %v2208 = vpop.xlane.xlu0 %2207
      %v2209 = vsel %vm878, %v2153, inf
      %2210 = vmin.xlane.f32.xlu0 %v2209
      %v2211 = vpop.xlane.xlu0 %2210
      %v2212 = vsel %vm878, %v2154, inf
      %2213 = vmin.xlane.f32.xlu0 %v2212
      %v2214 = vpop.xlane.xlu0 %2213
      %v2215 = vsel %vm878, %v2155, inf
      %2216 = vmin.xlane.f32.xlu0 %v2215
      %v2217 = vpop.xlane.xlu0 %2216
      %v2218 = vsel %vm878, %v2156, inf
      %2219 = vmin.xlane.f32.xlu0 %v2218
      %v2220 = vpop.xlane.xlu0 %2219
      %v2221 = vsel %vm878, %v2157, inf
      %2222 = vmin.xlane.f32.xlu0 %v2221
      %v2223 = vpop.xlane.xlu0 %2222
      %v2224 = vsel %vm878, %v2158, inf
      %2225 = vmin.xlane.f32.xlu0 %v2224
      %v2226 = vpop.xlane.xlu0 %2225
      %v2227 = vsel %vm878, %v2159, inf
      %2228 = vmin.xlane.f32.xlu0 %v2227
      %v2229 = vpop.xlane.xlu0 %2228
      %v2230 = vsel %vm878, %v2160, inf
      %2231 = vmin.xlane.f32.xlu0 %v2230
      %v2232 = vpop.xlane.xlu0 %2231
      %v2233 = vsel %vm878, %v2161, inf
      %2234 = vmin.xlane.f32.xlu0 %v2233
      %v2235 = vpop.xlane.xlu0 %2234
      %v2236 = vsel %vm878, %v2162, inf
      %2237 = vmin.xlane.f32.xlu0 %v2236
      %v2238 = vpop.xlane.xlu0 %2237
      %v2239 = vsel %vm878, %v2163, inf
      %2240 = vmin.xlane.f32.xlu0 %v2239
      %v2241 = vpop.xlane.xlu0 %2240
      %v2242 = vsel %vm878, %v2164, inf
      %2243 = vmin.xlane.f32.xlu0 %v2242
      %v2244 = vpop.xlane.xlu0 %2243
      %v2245 = vsel %vm878, %v2165, inf
      %2246 = vmin.xlane.f32.xlu0 %v2245
      %v2247 = vpop.xlane.xlu0 %2246
      %v2248 = vsel %vm878, %v2166, inf
      %2249 = vmin.xlane.f32.xlu0 %v2248
      %v2250 = vpop.xlane.xlu0 %2249
      %v2251 = vsel %vm878, %v2167, inf
      %2252 = vmin.xlane.f32.xlu0 %v2251
      %v2253 = vpop.xlane.xlu0 %2252
      %v2254 = vsel %vm878, %v2168, inf
      %2255 = vmin.xlane.f32.xlu0 %v2254
      %v2256 = vpop.xlane.xlu0 %2255
      %v2257 = vsel %vm878, %v2169, inf
      %2258 = vmin.xlane.f32.xlu0 %v2257
      %v2259 = vpop.xlane.xlu0 %2258
      %v2260 = vsel %vm878, %v2170, inf
      %2261 = vmin.xlane.f32.xlu0 %v2260
      %v2262 = vpop.xlane.xlu0 %2261
      %v2263 = vsel %vm878, %v2171, inf
      %2264 = vmin.xlane.f32.xlu0 %v2263
      %v2265 = vpop.xlane.xlu0 %2264
      %v2266 = vsel %vm878, %v2172, inf
      %2267 = vmin.xlane.f32.xlu0 %v2266
      %v2268 = vpop.xlane.xlu0 %2267
      %v2269 = vcvt.f32.s32.to.zero.pseudo %v2175
      %v2270 = vcvt.f32.s32.to.zero.pseudo %v2178
      %v2271 = vcvt.f32.s32.to.zero.pseudo %v2181
      %v2272 = vcvt.f32.s32.to.zero.pseudo %v2184
      %v2273 = vcvt.f32.s32.to.zero.pseudo %v2187
      %v2274 = vcvt.f32.s32.to.zero.pseudo %v2190
      %v2275 = vcvt.f32.s32.to.zero.pseudo %v2193
      %v2276 = vcvt.f32.s32.to.zero.pseudo %v2196
      %v2277 = vcvt.f32.s32.to.zero.pseudo %v2199
      %v2278 = vcvt.f32.s32.to.zero.pseudo %v2202
      %v2279 = vcvt.f32.s32.to.zero.pseudo %v2205
      %v2280 = vcvt.f32.s32.to.zero.pseudo %v2208
      %v2281 = vcvt.f32.s32.to.zero.pseudo %v2211
      %v2282 = vcvt.f32.s32.to.zero.pseudo %v2214
      %v2283 = vcvt.f32.s32.to.zero.pseudo %v2217
      %v2284 = vcvt.f32.s32.to.zero.pseudo %v2220
      %v2285 = vcvt.f32.s32.to.zero.pseudo %v2223
      %v2286 = vcvt.f32.s32.to.zero.pseudo %v2226
      %v2287 = vcvt.f32.s32.to.zero.pseudo %v2229
      %v2288 = vcvt.f32.s32.to.zero.pseudo %v2232
      %v2289 = vcvt.f32.s32.to.zero.pseudo %v2235
      %v2290 = vcvt.f32.s32.to.zero.pseudo %v2238
      %v2291 = vcvt.f32.s32.to.zero.pseudo %v2241
      %v2292 = vcvt.f32.s32.to.zero.pseudo %v2244
      %v2293 = vcvt.f32.s32.to.zero.pseudo %v2247
      %v2294 = vcvt.f32.s32.to.zero.pseudo %v2250
      %v2295 = vcvt.f32.s32.to.zero.pseudo %v2253
      %v2296 = vcvt.f32.s32.to.zero.pseudo %v2256
      %v2297 = vcvt.f32.s32.to.zero.pseudo %v2259
      %v2298 = vcvt.f32.s32.to.zero.pseudo %v2262
      %v2299 = vcvt.f32.s32.to.zero.pseudo %v2265
      %v2300 = vcvt.f32.s32.to.zero.pseudo %v2268
      %v2301 = vld [vmem:[%s446] sm:$0xff]
      %v2302 = vld [vmem:[%s446 + $0x8] sm:$0xff]
      %v2303 = vld [vmem:[%s446 + $0x10] sm:$0xff]
      %v2304 = vld [vmem:[%s446 + $0x18] sm:$0xff]
      %v2305 = vld [vmem:[%s446 + $0x20] sm:$0xff]
      %v2306 = vld [vmem:[%s446 + $0x28] sm:$0xff]
      %v2307 = vld [vmem:[%s446 + $0x30] sm:$0xff]
      %v2308 = vld [vmem:[%s446 + $0x38] sm:$0xff]
      %v2309 = vld [vmem:[%s446 + $0x40] sm:$0xff]
      %v2310 = vld [vmem:[%s446 + $0x48] sm:$0xff]
      %v2311 = vld [vmem:[%s446 + $0x50] sm:$0xff]
      %v2312 = vld [vmem:[%s446 + $0x58] sm:$0xff]
      %v2313 = vld [vmem:[%s446 + $0x60] sm:$0xff]
      %v2314 = vld [vmem:[%s446 + $0x68] sm:$0xff]
      %v2315 = vld [vmem:[%s446 + $0x70] sm:$0xff]
      %v2316 = vld [vmem:[%s446 + $0x78] sm:$0xff]
      %v2317 = vld [vmem:[%s446 + $0x80] sm:$0xff]
      %v2318 = vld [vmem:[%s446 + $0x88] sm:$0xff]
      %v2319 = vld [vmem:[%s446 + $0x90] sm:$0xff]
      %v2320 = vld [vmem:[%s446 + $0x98] sm:$0xff]
      %v2321 = vld [vmem:[%s446 + $0xa0] sm:$0xff]
      %v2322 = vld [vmem:[%s446 + $0xa8] sm:$0xff]
      %v2323 = vld [vmem:[%s446 + $0xb0] sm:$0xff]
      %v2324 = vld [vmem:[%s446 + $0xb8] sm:$0xff]
      %v2325 = vld [vmem:[%s446 + $0xc0] sm:$0xff]
      %v2326 = vld [vmem:[%s446 + $0xc8] sm:$0xff]
      %v2327 = vld [vmem:[%s446 + $0xd0] sm:$0xff]
      %v2328 = vld [vmem:[%s446 + $0xd8] sm:$0xff]
      %v2329 = vld [vmem:[%s446 + $0xe0] sm:$0xff]
      %v2330 = vld [vmem:[%s446 + $0xe8] sm:$0xff]
      %v2331 = vld [vmem:[%s446 + $0xf0] sm:$0xff]
      %v2332 = vld [vmem:[%s446 + $0xf8] sm:$0xff]
      %v2333 = vsel %vm2076, %v2269, %v2301
      %v2334 = vsel %vm2077, %v2270, %v2302
      %v2335 = vsel %vm2078, %v2271, %v2303
      %v2336 = vsel %vm2079, %v2272, %v2304
      %v2337 = vsel %vm2080, %v2273, %v2305
      %v2338 = vsel %vm2081, %v2274, %v2306
      %v2339 = vsel %vm2082, %v2275, %v2307
      %v2340 = vsel %vm2083, %v2276, %v2308
      %v2341 = vsel %vm2084, %v2277, %v2309
      %v2342 = vsel %vm2085, %v2278, %v2310
      %v2343 = vsel %vm2086, %v2279, %v2311
      %v2344 = vsel %vm2087, %v2280, %v2312
      %v2345 = vsel %vm2088, %v2281, %v2313
      %v2346 = vsel %vm2089, %v2282, %v2314
      %v2347 = vsel %vm2090, %v2283, %v2315
      %v2348 = vsel %vm2091, %v2284, %v2316
      %v2349 = vsel %vm2092, %v2285, %v2317
      %v2350 = vsel %vm2093, %v2286, %v2318
      %v2351 = vsel %vm2094, %v2287, %v2319
      %v2352 = vsel %vm2095, %v2288, %v2320
      %v2353 = vsel %vm2096, %v2289, %v2321
      %v2354 = vsel %vm2097, %v2290, %v2322
      %v2355 = vsel %vm2098, %v2291, %v2323
      %v2356 = vsel %vm2099, %v2292, %v2324
      %v2357 = vsel %vm2100, %v2293, %v2325
      %v2358 = vsel %vm2101, %v2294, %v2326
      %v2359 = vsel %vm2102, %v2295, %v2327
      %v2360 = vsel %vm2103, %v2296, %v2328
      %v2361 = vsel %vm2104, %v2297, %v2329
      %v2362 = vsel %vm2105, %v2298, %v2330
      %v2363 = vsel %vm2106, %v2299, %v2331
      %v2364 = vsel %vm2107, %v2300, %v2332
      %vm2365 = vcmask 7168
      %2366 = vst.msk [vmem:[%s446] sm:$0xff] %vm2365, %v2333
      %2367 = vst.msk [vmem:[%s446 + $0x8] sm:$0xff] %vm2365, %v2334
      %2368 = vst.msk [vmem:[%s446 + $0x10] sm:$0xff] %vm2365, %v2335
      %2369 = vst.msk [vmem:[%s446 + $0x18] sm:$0xff] %vm2365, %v2336
      %2370 = vst.msk [vmem:[%s446 + $0x20] sm:$0xff] %vm2365, %v2337
      %2371 = vst.msk [vmem:[%s446 + $0x28] sm:$0xff] %vm2365, %v2338
      %2372 = vst.msk [vmem:[%s446 + $0x30] sm:$0xff] %vm2365, %v2339
      %2373 = vst.msk [vmem:[%s446 + $0x38] sm:$0xff] %vm2365, %v2340
      %2374 = vst.msk [vmem:[%s446 + $0x40] sm:$0xff] %vm2365, %v2341
      %2375 = vst.msk [vmem:[%s446 + $0x48] sm:$0xff] %vm2365, %v2342
      %2376 = vst.msk [vmem:[%s446 + $0x50] sm:$0xff] %vm2365, %v2343
      %2377 = vst.msk [vmem:[%s446 + $0x58] sm:$0xff] %vm2365, %v2344
      %2378 = vst.msk [vmem:[%s446 + $0x60] sm:$0xff] %vm2365, %v2345
      %2379 = vst.msk [vmem:[%s446 + $0x68] sm:$0xff] %vm2365, %v2346
      %2380 = vst.msk [vmem:[%s446 + $0x70] sm:$0xff] %vm2365, %v2347
      %2381 = vst.msk [vmem:[%s446 + $0x78] sm:$0xff] %vm2365, %v2348
      %2382 = vst.msk [vmem:[%s446 + $0x80] sm:$0xff] %vm2365, %v2349
      %2383 = vst.msk [vmem:[%s446 + $0x88] sm:$0xff] %vm2365, %v2350
      %2384 = vst.msk [vmem:[%s446 + $0x90] sm:$0xff] %vm2365, %v2351
      %2385 = vst.msk [vmem:[%s446 + $0x98] sm:$0xff] %vm2365, %v2352
      %2386 = vst.msk [vmem:[%s446 + $0xa0] sm:$0xff] %vm2365, %v2353
      %2387 = vst.msk [vmem:[%s446 + $0xa8] sm:$0xff] %vm2365, %v2354
      %2388 = vst.msk [vmem:[%s446 + $0xb0] sm:$0xff] %vm2365, %v2355
      %2389 = vst.msk [vmem:[%s446 + $0xb8] sm:$0xff] %vm2365, %v2356
      %2390 = vst.msk [vmem:[%s446 + $0xc0] sm:$0xff] %vm2365, %v2357
      %2391 = vst.msk [vmem:[%s446 + $0xc8] sm:$0xff] %vm2365, %v2358
      %2392 = vst.msk [vmem:[%s446 + $0xd0] sm:$0xff] %vm2365, %v2359
      %2393 = vst.msk [vmem:[%s446 + $0xd8] sm:$0xff] %vm2365, %v2360
      %2394 = vst.msk [vmem:[%s446 + $0xe0] sm:$0xff] %vm2365, %v2361
      %2395 = vst.msk [vmem:[%s446 + $0xe8] sm:$0xff] %vm2365, %v2362
      %2396 = vst.msk [vmem:[%s446 + $0xf0] sm:$0xff] %vm2365, %v2363
      %2397 = vst.msk [vmem:[%s446 + $0xf8] sm:$0xff] %vm2365, %v2364
      %v2398 = vld [vmem:[%s441] sm:$0xff]
      %v2399 = vld [vmem:[%s441 + $0x8] sm:$0xff]
      %v2400 = vld [vmem:[%s441 + $0x10] sm:$0xff]
      %v2401 = vld [vmem:[%s441 + $0x18] sm:$0xff]
      %v2402 = vld [vmem:[%s441 + $0x20] sm:$0xff]
      %v2403 = vld [vmem:[%s441 + $0x28] sm:$0xff]
      %v2404 = vld [vmem:[%s441 + $0x30] sm:$0xff]
      %v2405 = vld [vmem:[%s441 + $0x38] sm:$0xff]
      %v2406 = vld [vmem:[%s441 + $0x40] sm:$0xff]
      %v2407 = vld [vmem:[%s441 + $0x48] sm:$0xff]
      %v2408 = vld [vmem:[%s441 + $0x50] sm:$0xff]
      %v2409 = vld [vmem:[%s441 + $0x58] sm:$0xff]
      %v2410 = vld [vmem:[%s441 + $0x60] sm:$0xff]
      %v2411 = vld [vmem:[%s441 + $0x68] sm:$0xff]
      %v2412 = vld [vmem:[%s441 + $0x70] sm:$0xff]
      %v2413 = vld [vmem:[%s441 + $0x78] sm:$0xff]
      %v2414 = vld [vmem:[%s441 + $0x80] sm:$0xff]
      %v2415 = vld [vmem:[%s441 + $0x88] sm:$0xff]
      %v2416 = vld [vmem:[%s441 + $0x90] sm:$0xff]
      %v2417 = vld [vmem:[%s441 + $0x98] sm:$0xff]
      %v2418 = vld [vmem:[%s441 + $0xa0] sm:$0xff]
      %v2419 = vld [vmem:[%s441 + $0xa8] sm:$0xff]
      %v2420 = vld [vmem:[%s441 + $0xb0] sm:$0xff]
      %v2421 = vld [vmem:[%s441 + $0xb8] sm:$0xff]
      %v2422 = vld [vmem:[%s441 + $0xc0] sm:$0xff]
      %v2423 = vld [vmem:[%s441 + $0xc8] sm:$0xff]
      %v2424 = vld [vmem:[%s441 + $0xd0] sm:$0xff]
      %v2425 = vld [vmem:[%s441 + $0xd8] sm:$0xff]
      %v2426 = vld [vmem:[%s441 + $0xe0] sm:$0xff]
      %v2427 = vld [vmem:[%s441 + $0xe8] sm:$0xff]
      %v2428 = vld [vmem:[%s441 + $0xf0] sm:$0xff]
      %v2429 = vld [vmem:[%s441 + $0xf8] sm:$0xff]
      %v2430 = vsel %vm2076, %v1950, %v2398
      %v2431 = vsel %vm2077, %v1953, %v2399
      %v2432 = vsel %vm2078, %v1956, %v2400
      %v2433 = vsel %vm2079, %v1959, %v2401
      %v2434 = vsel %vm2080, %v1962, %v2402
      %v2435 = vsel %vm2081, %v1965, %v2403
      %v2436 = vsel %vm2082, %v1968, %v2404
      %v2437 = vsel %vm2083, %v1971, %v2405
      %v2438 = vsel %vm2084, %v1974, %v2406
      %v2439 = vsel %vm2085, %v1977, %v2407
      %v2440 = vsel %vm2086, %v1980, %v2408
      %v2441 = vsel %vm2087, %v1983, %v2409
      %v2442 = vsel %vm2088, %v1986, %v2410
      %v2443 = vsel %vm2089, %v1989, %v2411
      %v2444 = vsel %vm2090, %v1992, %v2412
      %v2445 = vsel %vm2091, %v1995, %v2413
      %v2446 = vsel %vm2092, %v1998, %v2414
      %v2447 = vsel %vm2093, %v2001, %v2415
      %v2448 = vsel %vm2094, %v2004, %v2416
      %v2449 = vsel %vm2095, %v2007, %v2417
      %v2450 = vsel %vm2096, %v2010, %v2418
      %v2451 = vsel %vm2097, %v2013, %v2419
      %v2452 = vsel %vm2098, %v2016, %v2420
      %v2453 = vsel %vm2099, %v2019, %v2421
      %v2454 = vsel %vm2100, %v2022, %v2422
      %v2455 = vsel %vm2101, %v2025, %v2423
      %v2456 = vsel %vm2102, %v2028, %v2424
      %v2457 = vsel %vm2103, %v2031, %v2425
      %v2458 = vsel %vm2104, %v2034, %v2426
      %v2459 = vsel %vm2105, %v2037, %v2427
      %v2460 = vsel %vm2106, %v2040, %v2428
      %v2461 = vsel %vm2107, %v2043, %v2429
      %2462 = vst.msk [vmem:[%s441] sm:$0xff] %vm2365, %v2430
      %2463 = vst.msk [vmem:[%s441 + $0x8] sm:$0xff] %vm2365, %v2431
      %2464 = vst.msk [vmem:[%s441 + $0x10] sm:$0xff] %vm2365, %v2432
      %2465 = vst.msk [vmem:[%s441 + $0x18] sm:$0xff] %vm2365, %v2433
      %2466 = vst.msk [vmem:[%s441 + $0x20] sm:$0xff] %vm2365, %v2434
      %2467 = vst.msk [vmem:[%s441 + $0x28] sm:$0xff] %vm2365, %v2435
      %2468 = vst.msk [vmem:[%s441 + $0x30] sm:$0xff] %vm2365, %v2436
      %2469 = vst.msk [vmem:[%s441 + $0x38] sm:$0xff] %vm2365, %v2437
      %2470 = vst.msk [vmem:[%s441 + $0x40] sm:$0xff] %vm2365, %v2438
      %2471 = vst.msk [vmem:[%s441 + $0x48] sm:$0xff] %vm2365, %v2439
      %2472 = vst.msk [vmem:[%s441 + $0x50] sm:$0xff] %vm2365, %v2440
      %2473 = vst.msk [vmem:[%s441 + $0x58] sm:$0xff] %vm2365, %v2441
      %2474 = vst.msk [vmem:[%s441 + $0x60] sm:$0xff] %vm2365, %v2442
      %2475 = vst.msk [vmem:[%s441 + $0x68] sm:$0xff] %vm2365, %v2443
      %2476 = vst.msk [vmem:[%s441 + $0x70] sm:$0xff] %vm2365, %v2444
      %2477 = vst.msk [vmem:[%s441 + $0x78] sm:$0xff] %vm2365, %v2445
      %2478 = vst.msk [vmem:[%s441 + $0x80] sm:$0xff] %vm2365, %v2446
      %2479 = vst.msk [vmem:[%s441 + $0x88] sm:$0xff] %vm2365, %v2447
      %2480 = vst.msk [vmem:[%s441 + $0x90] sm:$0xff] %vm2365, %v2448
      %2481 = vst.msk [vmem:[%s441 + $0x98] sm:$0xff] %vm2365, %v2449
      %2482 = vst.msk [vmem:[%s441 + $0xa0] sm:$0xff] %vm2365, %v2450
      %2483 = vst.msk [vmem:[%s441 + $0xa8] sm:$0xff] %vm2365, %v2451
      %2484 = vst.msk [vmem:[%s441 + $0xb0] sm:$0xff] %vm2365, %v2452
      %2485 = vst.msk [vmem:[%s441 + $0xb8] sm:$0xff] %vm2365, %v2453
      %2486 = vst.msk [vmem:[%s441 + $0xc0] sm:$0xff] %vm2365, %v2454
      %2487 = vst.msk [vmem:[%s441 + $0xc8] sm:$0xff] %vm2365, %v2455
      %2488 = vst.msk [vmem:[%s441 + $0xd0] sm:$0xff] %vm2365, %v2456
      %2489 = vst.msk [vmem:[%s441 + $0xd8] sm:$0xff] %vm2365, %v2457
      %2490 = vst.msk [vmem:[%s441 + $0xe0] sm:$0xff] %vm2365, %v2458
      %2491 = vst.msk [vmem:[%s441 + $0xe8] sm:$0xff] %vm2365, %v2459
      %2492 = vst.msk [vmem:[%s441 + $0xf0] sm:$0xff] %vm2365, %v2460
      %2493 = vst.msk [vmem:[%s441 + $0xf8] sm:$0xff] %vm2365, %v2461
      %p2494 = scmp.lt.s32.totalorder %s28, 1
      %s2495 = scalar_select %p2494, %s28, 1
      %s2496 = smul.addr %s2495, 32
      %s2497 = smul.addr %s2496, 8
      %s2498 = scalar_lea.vmem %s11, %s2497
      %p2499 = scmp.lt.s32.totalorder %s28, 1
      %s2500 = scalar_select %p2499, %s28, 1
      %s2501 = smul.addr %s2500, 32
      %s2502 = smul.addr %s2501, 8
      %s2503 = scalar_lea.vmem %s12, %s2502
      // Predicated region
      $region69: #{tpu_custom_call.1} parent=63 // pred_check
        %p2504 = pneg %p292
      $region70: #{tpu_custom_call.1} parent=63 // pred_check_branch
        %2506 = sbr.rel (%p2504) target = $region72
      $region71: #{tpu_custom_call.1} parent=63 // pred_region
        _
      $region72: #{tpu_custom_call.1} parent=63 // pred_fallthru
        _
      // Predicated region
      $region73: #{tpu_custom_call.1} parent=63 // pred_check
        %p2507 = pneg %p318
      $region74: #{tpu_custom_call.1} parent=63 // pred_check_branch
        %2509 = sbr.rel (%p2507) target = $region76
      $region75: #{tpu_custom_call.1} parent=63 // pred_region
        _
      $region76: #{tpu_custom_call.1} parent=63 // pred_fallthru
        _
    $region64: #{tpu_custom_call.1} parent=5 // pred_fallthru
      _
    %p2510 = scmp.le.s32.totalorder 2, %s19
    // Predicated region
    $region77: #{tpu_custom_call.1} parent=5 // pred_check
      %p2511 = pneg %p2510
    $region78: #{tpu_custom_call.1} parent=5 // pred_check_branch
      %2513 = sbr.rel (%p2511) target = $region80
    $region79: #{tpu_custom_call.1} parent=5 // pred_region
      %s2514 = ssub.s32 %s19, 2
      // Predicated region
      $region81: #{tpu_custom_call.1} parent=79 // pred_check
        %p2515 = pneg %p298
      $region82: #{tpu_custom_call.1} parent=79 // pred_check_branch
        %2517 = sbr.rel (%p2515) target = $region84
      $region83: #{tpu_custom_call.1} parent=79 // pred_region
        %p2518 = scmp.lt.s32.totalorder %s30, 1
        %s2519 = scalar_select %p2518, %s30, 1
        %s2520 = smul.addr %s2519, 32
        %s2521 = smul.addr %s2520, 8
        %s2522 = scalar_lea.vmem %s11, %s2521
      $region84: #{tpu_custom_call.1} parent=79 // pred_fallthru
        _
      // Predicated region
      $region85: #{tpu_custom_call.1} parent=79 // pred_check
        %p2523 = pneg %p324
      $region86: #{tpu_custom_call.1} parent=79 // pred_check_branch
        %2525 = sbr.rel (%p2523) target = $region88
      $region87: #{tpu_custom_call.1} parent=79 // pred_region
        %p2526 = scmp.lt.s32.totalorder %s30, 1
        %s2527 = scalar_select %p2526, %s30, 1
        %s2528 = smul.addr %s2527, 32
        %s2529 = smul.addr %s2528, 8
        %s2530 = scalar_lea.vmem %s12, %s2529
      $region88: #{tpu_custom_call.1} parent=79 // pred_fallthru
        _
    $region80: #{tpu_custom_call.1} parent=5 // pred_fallthru
      _
  $region6: #{tpu_custom_call.1} parent=0 // loop_footer
    %s23 = sadd.s32 1, %s19
  $region7: #{tpu_custom_call.1} parent=0 // loop_footer_branch
    %18 = sbr.rel target = $region3
  $region8: #{tpu_custom_call.1} parent=0 // loop_exit
    _

</llo_original>
